<compile_context>
chip_gen: v5e
topology: v5e:2x2
jax: 0.10.0
libtpu: 0.0.40
codegen_flags: <defaults>
</compile_context>

<pallas_src>
import numpy as np
import jax
import jax.numpy as jnp
from jax.experimental import pallas as pl
from jax.experimental.pallas import tpu as pltpu

FEA = 32       # fea_size
GATE = 128     # gate_width / filter_size
OUT_PAD = 128  # lane-dense output width (multiple of 128, >= FEA)
N_OBJ = 8      # number of object nodes
N_PRD = 8      # number of phrase (predicate) nodes


def _full_spec(shape):
    nd = len(shape)
    return pl.BlockSpec(shape, lambda *_: (0,) * nd)


# ---------------------------------------------------------------------------
# Fused kernel: 4x message passing + 2x GRU in one body
# ---------------------------------------------------------------------------
def _msdn_step_kernel(fo_ref, fp_ref,
                      sel_p2s_ref, sel_p2o_ref, sel_s2p_ref, sel_o2p_ref,
                      gwu_ref, gwp_ref, gb_ref,
                      wih_ref, whh_ref, bih_ref, bhh_ref,
                      out_ref):
    """One full MSDN update step.

    fo/fp            : (N_obj, F) / (N_prd, F) node features
    sel_*            : dense select matrices (T, S), >0 marks an edge
    gwu/gwp          : (4, F, GATE)   split + transposed gate weights
    gb               : (4, 1, GATE)   gate biases
    wih/whh          : (2, F, OUT_PAD) GRU weights, output dim zero-padded to 128
    bih/bhh          : (2, 1, OUT_PAD) GRU biases, zero-padded
    out              : (N_obj + N_prd, OUT_PAD) lane-dense result slab
    """
    fo = fo_ref[...]
    fp = fp_ref[...]
    fo_r = jnp.maximum(fo, 0.0)
    fp_r = jnp.maximum(fp, 0.0)

    def message(tgt_r, src_r, src_raw, sel, idx):
        # Dense Message_Passing_Unit_v1 + per-target mean aggregation:
        #   gate[t,s] = mean_g sigmoid(relu(tgt[t]) @ Wu + relu(src[s]) @ Wp + b)
        #   out[t]    = sum_s (mask[t,s]/deg[t]) * gate[t,s] * src[s]   (0 if deg==0)
        # The /2 averaging of the two message sources (step()) is folded into 0.5.
        a = jnp.dot(tgt_r, gwu_ref[idx], preferred_element_type=jnp.float32)   # (T, GATE)
        b = jnp.dot(src_r, gwp_ref[idx], preferred_element_type=jnp.float32)   # (S, GATE)
        logits = a[:, None, :] + b[None, :, :] + gb_ref[idx][None, :, :]        # (T, S, GATE)
        gate = jnp.mean(jax.nn.sigmoid(logits), axis=-1)                        # (T, S)
        mask = jnp.where(sel > 0.0, 1.0, 0.0)
        deg = jnp.sum(mask, axis=1, keepdims=True)                              # (T, 1)
        inv = jnp.where(deg > 0.0, 0.5 / jnp.maximum(deg, 1.0), 0.0)
        w = mask * inv * gate                                                    # (T, S)
        return jnp.dot(w, src_raw, preferred_element_type=jnp.float32)           # (T, F)

    msg_obj = (message(fo_r, fp_r, fp, sel_p2s_ref[...], 0)
               + message(fo_r, fp_r, fp, sel_p2o_ref[...], 1))
    msg_prd = (message(fp_r, fo_r, fo, sel_s2p_ref[...], 2)
               + message(fp_r, fo_r, fo, sel_o2p_ref[...], 3))

    # TODO(synk): F.dropout is a no-op here (module default dropout=False / eval mode).
    def gru(x, h_r, idx):
        xr = jnp.maximum(x, 0.0)
        return (jnp.dot(xr, wih_ref[idx], preferred_element_type=jnp.float32)
                + bih_ref[idx]
                + jnp.dot(h_r, whh_ref[idx], preferred_element_type=jnp.float32)
                + bhh_ref[idx])

    new_obj = gru(msg_obj, fo_r, 0)   # (N_obj, OUT_PAD); lanes >= FEA are exactly 0
    new_prd = gru(msg_prd, fp_r, 1)   # (N_prd, OUT_PAD)
    out_ref[...] = jnp.concatenate([new_obj, new_prd], axis=0)


# ---------------------------------------------------------------------------
# Jitted wrapper: single pallas_call, lane-dense output sliced back to (N, F)
# ---------------------------------------------------------------------------
@jax.jit
def _msdn_step(feature_obj, feature_phrase,
               sel_p2s, sel_p2o, sel_s2p, sel_o2p,
               gwu, gwp, gb, wih, whh, bih, bhh):
    n_obj, fea = feature_obj.shape
    n_prd = feature_phrase.shape[0]
    n_rows = n_obj + n_prd
    gate = gwu.shape[-1]

    flops = (4 * 2 * fea * gate * (n_obj + n_prd)        # gate projections
             + 4 * 2 * n_obj * n_prd * fea                # message aggregation matmuls
             + 4 * fea * OUT_PAD * (n_obj + n_prd))       # GRU matmuls
    transcendentals = 4 * n_obj * n_prd * gate            # sigmoids
    bytes_accessed = 4 * (feature_obj.size + feature_phrase.size
                          + sel_p2s.size + sel_p2o.size + sel_s2p.size + sel_o2p.size
                          + gwu.size + gwp.size + gb.size
                          + wih.size + whh.size + bih.size + bhh.size
                          + n_rows * OUT_PAD)

    args = (feature_obj, feature_phrase, sel_p2s, sel_p2o, sel_s2p, sel_o2p,
            gwu, gwp, gb, wih, whh, bih, bhh)
    out = pl.pallas_call(
        _msdn_step_kernel,
        grid=(1,),
        in_specs=[_full_spec(a.shape) for a in args],
        out_specs=_full_spec((n_rows, OUT_PAD)),
        out_shape=jax.ShapeDtypeStruct((n_rows, OUT_PAD), jnp.float32),
        compiler_params=pltpu.CompilerParams(dimension_semantics=("arbitrary",)),
        cost_estimate=pl.CostEstimate(flops=flops,
                                      transcendentals=transcendentals,
                                      bytes_accessed=bytes_accessed),
    )(*args)
    return out[:n_obj, :fea], out[n_obj:, :fea]


# ---------------------------------------------------------------------------
# Module: deterministic parameter init (torch nn.Linear default: U(-k, k), k=1/sqrt(in))
# ---------------------------------------------------------------------------
def _linear_params(key, in_f, out_f):
    k = 1.0 / np.sqrt(in_f)
    kw, kb = jax.random.split(key)
    w = jax.random.uniform(kw, (out_f, in_f), jnp.float32, -k, k)   # torch (out, in) layout
    b = jax.random.uniform(kb, (out_f,), jnp.float32, -k, k)
    return w, b


class MSDNBasePallas:
    """MSDN_BASE message-passing step built on one fused Pallas TPU kernel."""

    def __init__(self, fea_size=FEA, gate_width=GATE, key=None):
        assert fea_size <= OUT_PAD
        key = jax.random.PRNGKey(0) if key is None else key
        ks = jax.random.split(key, 8)
        # torch-layout params kept for the reference check
        self.gate_sub2pred = _linear_params(ks[0], fea_size * 2, gate_width)
        self.gate_obj2pred = _linear_params(ks[1], fea_size * 2, gate_width)
        self.gate_pred2sub = _linear_params(ks[2], fea_size * 2, gate_width)
        self.gate_pred2obj = _linear_params(ks[3], fea_size * 2, gate_width)
        self.gru_object = (_linear_params(ks[4], fea_size, fea_size),
                           _linear_params(ks[5], fea_size, fea_size))
        self.gru_pred = (_linear_params(ks[6], fea_size, fea_size),
                         _linear_params(ks[7], fea_size, fea_size))

        # ---- one-time prepack: transposed / padded / stacked kernel operands ----
        def pack_gate(w, b):
            wu = jnp.transpose(w[:, :fea_size])        # (F, GATE)
            wp = jnp.transpose(w[:, fea_size:])        # (F, GATE)
            return wu, wp, b.reshape(1, gate_width)

        gates = (self.gate_pred2sub, self.gate_pred2obj,
                 self.gate_sub2pred, self.gate_obj2pred)
        wu_l, wp_l, b_l = zip(*(pack_gate(w, b) for (w, b) in gates))
        self._gwu = jnp.stack(wu_l)                    # (4, F, GATE)
        self._gwp = jnp.stack(wp_l)                    # (4, F, GATE)
        self._gb = jnp.stack(b_l)                      # (4, 1, GATE)

        pad = OUT_PAD - fea_size

        def pack_gru(params):
            (wih, bih), (whh, bhh) = params
            wih_t = jnp.pad(jnp.transpose(wih), ((0, 0), (0, pad)))   # (F, OUT_PAD)
            whh_t = jnp.pad(jnp.transpose(whh), ((0, 0), (0, pad)))
            bih_p = jnp.pad(bih, (0, pad)).reshape(1, OUT_PAD)
            bhh_p = jnp.pad(bhh, (0, pad)).reshape(1, OUT_PAD)
            return wih_t, whh_t, bih_p, bhh_p

        wih_o, whh_o, bih_o, bhh_o = pack_gru(self.gru_object)
        wih_p, whh_p, bih_p, bhh_p = pack_gru(self.gru_pred)
        self._wih = jnp.stack([wih_o, wih_p])          # (2, F, OUT_PAD)
        self._whh = jnp.stack([whh_o, whh_p])
        self._bih = jnp.stack([bih_o, bih_p])          # (2, 1, OUT_PAD)
        self._bhh = jnp.stack([bhh_o, bhh_p])

    def step(self, feature_obj, feature_phrase,
             mps_pred2sub, mps_pred2obj, mps_sub2pred, mps_obj2pred):
        """One MSDN message-passing update step (fused kernel).

        TODO(synk): the select_mat.sum()==0 branch of the reference returns a single
        (1, fea) zero row (shape quirk); the dense kernel returns the sensible all-zero
        (T, fea) instead.  Rows without incoming edges are zero in both.
        """
        sels = tuple(jnp.asarray(m, jnp.float32)
                     for m in (mps_pred2sub, mps_pred2obj, mps_sub2pred, mps_obj2pred))
        return _msdn_step(feature_obj, feature_phrase, *sels,
                          self._gwu, self._gwp, self._gb,
                          self._wih, self._whh, self._bih, self._bhh)


# ---------------------------------------------------------------------------
# Pure-numpy reference (mirrors the PyTorch code path) for verification
# ---------------------------------------------------------------------------
def _ref_prepare_message(tgt, src, sel, w, b):
    tgt, src, w, b = map(np.asarray, (tgt, src, w, b))
    T, F = tgt.shape
    ti, si = np.nonzero(sel > 0)
    u = tgt[ti]; p = src[si]
    g = np.concatenate([np.maximum(u, 0), np.maximum(p, 0)], 1)
    g = 1.0 / (1.0 + np.exp(-(g @ w.T + b)))
    g = g.mean(1, keepdims=True)
    tr = p * g
    out = np.zeros((T, F), np.float32)
    for i in range(T):
        m = ti == i
        if m.sum() > 0:
            out[i] = tr[m].mean(0)
    return out


def _ref_gru(x, h, params):
    (wih, bih), (whh, bhh) = [(np.asarray(w), np.asarray(b)) for (w, b) in params]
    x, h = np.asarray(x), np.asarray(h)
    return np.maximum(x, 0) @ wih.T + bih + np.maximum(h, 0) @ whh.T + bhh


# ---------------------------------------------------------------------------
if __name__ == "__main__":
    key = jax.random.PRNGKey(0)
    k_feat_o, k_feat_p, k_params = jax.random.split(key, 3)

    feature_obj = jax.random.normal(k_feat_o, (N_OBJ, FEA), jnp.float32)
    feature_phrase = jax.random.normal(k_feat_p, (N_PRD, FEA), jnp.float32)

    # deterministic sparse connectivity (target x source)
    ii, jj = np.meshgrid(np.arange(N_OBJ), np.arange(N_PRD), indexing="ij")
    mps_pred2sub = ((ii + jj) % 3 == 0).astype(np.float32)        # (N_OBJ, N_PRD)
    mps_pred2obj = ((ii + 2 * jj) % 4 == 0).astype(np.float32)    # (N_OBJ, N_PRD)
    ii2, jj2 = np.meshgrid(np.arange(N_PRD), np.arange(N_OBJ), indexing="ij")
    mps_sub2pred = ((ii2 * 2 + jj2) % 3 == 0).astype(np.float32)  # (N_PRD, N_OBJ)
    mps_obj2pred = ((ii2 + jj2) % 2 == 0).astype(np.float32)      # (N_PRD, N_OBJ)

    model = MSDNBasePallas(FEA, GATE, key=k_params)

    new_obj, new_prd = model.step(feature_obj, feature_phrase,
                                  mps_pred2sub, mps_pred2obj,
                                  mps_sub2pred, mps_obj2pred)
    jax.block_until_ready((new_obj, new_prd))

    # verify against the straight-line numpy reference
    fo, fp = np.asarray(feature_obj), np.asarray(feature_phrase)
    ref_in_obj = (_ref_prepare_message(fo, fp, mps_pred2sub, *model.gate_pred2sub)
                  + _ref_prepare_message(fo, fp, mps_pred2obj, *model.gate_pred2obj)) / 2.0
    ref_in_prd = (_ref_prepare_message(fp, fo, mps_sub2pred, *model.gate_sub2pred)
                  + _ref_prepare_message(fp, fo, mps_obj2pred, *model.gate_obj2pred)) / 2.0
    ref_obj = _ref_gru(ref_in_obj, fo, model.gru_object)
    ref_prd = _ref_gru(ref_in_prd, fp, model.gru_pred)

    # tolerance accounts for DEFAULT-precision (bf16 MXU) matmuls vs float64 numpy
    np.testing.assert_allclose(np.asarray(new_obj), ref_obj, rtol=1e-2, atol=1e-2)
    np.testing.assert_allclose(np.asarray(new_prd), ref_prd, rtol=1e-2, atol=1e-2)

    print("KERNEL_OK")
</pallas_src>

<mosaic_0001>
module attributes {stable_mosaic.version = 11 : i64} {
  func.func @_msdn_step_kernel(%arg0: i32, %arg1: memref<8x32xf32, #tpu.memory_space<vmem>>, %arg2: memref<8x32xf32, #tpu.memory_space<vmem>>, %arg3: memref<8x8xf32, #tpu.memory_space<vmem>>, %arg4: memref<8x8xf32, #tpu.memory_space<vmem>>, %arg5: memref<8x8xf32, #tpu.memory_space<vmem>>, %arg6: memref<8x8xf32, #tpu.memory_space<vmem>>, %arg7: memref<4x32x128xf32, #tpu.memory_space<vmem>>, %arg8: memref<4x32x128xf32, #tpu.memory_space<vmem>>, %arg9: memref<4x1x128xf32, #tpu.memory_space<vmem>>, %arg10: memref<2x32x128xf32, #tpu.memory_space<vmem>>, %arg11: memref<2x32x128xf32, #tpu.memory_space<vmem>>, %arg12: memref<2x1x128xf32, #tpu.memory_space<vmem>>, %arg13: memref<2x1x128xf32, #tpu.memory_space<vmem>>, %arg14: memref<16x128xf32, #tpu.memory_space<vmem>>) attributes {dimension_semantics = [#tpu.dimension_semantics<arbitrary>], iteration_bounds = array<i64: 1>, scalar_prefetch = 0 : i64, scratch_operands = 0 : i64, tpu.core_type = #tpu.core_type<tc>, window_params = [{pipeline_mode = #tpu.pipeline_mode<synchronous>, transform_indices = @transform_0, window_bounds = array<i64: 8, 32>}, {pipeline_mode = #tpu.pipeline_mode<synchronous>, transform_indices = @transform_1, window_bounds = array<i64: 8, 32>}, {pipeline_mode = #tpu.pipeline_mode<synchronous>, transform_indices = @transform_2, window_bounds = array<i64: 8, 8>}, {pipeline_mode = #tpu.pipeline_mode<synchronous>, transform_indices = @transform_3, window_bounds = array<i64: 8, 8>}, {pipeline_mode = #tpu.pipeline_mode<synchronous>, transform_indices = @transform_4, window_bounds = array<i64: 8, 8>}, {pipeline_mode = #tpu.pipeline_mode<synchronous>, transform_indices = @transform_5, window_bounds = array<i64: 8, 8>}, {pipeline_mode = #tpu.pipeline_mode<synchronous>, transform_indices = @transform_6, window_bounds = array<i64: 4, 32, 128>}, {pipeline_mode = #tpu.pipeline_mode<synchronous>, transform_indices = @transform_7, window_bounds = array<i64: 4, 32, 128>}, {pipeline_mode = #tpu.pipeline_mode<synchronous>, transform_indices = @transform_8, window_bounds = array<i64: 4, 1, 128>}, {pipeline_mode = #tpu.pipeline_mode<synchronous>, transform_indices = @transform_9, window_bounds = array<i64: 2, 32, 128>}, {pipeline_mode = #tpu.pipeline_mode<synchronous>, transform_indices = @transform_10, window_bounds = array<i64: 2, 32, 128>}, {pipeline_mode = #tpu.pipeline_mode<synchronous>, transform_indices = @transform_11, window_bounds = array<i64: 2, 1, 128>}, {pipeline_mode = #tpu.pipeline_mode<synchronous>, transform_indices = @transform_12, window_bounds = array<i64: 2, 1, 128>}, {pipeline_mode = #tpu.pipeline_mode<synchronous>, transform_indices = @transform_13, window_bounds = array<i64: 16, 128>}]} {
    %c0 = arith.constant 0 : index
    %c0_0 = arith.constant 0 : index
    %0 = vector.load %arg1[%c0, %c0_0] : memref<8x32xf32, #tpu.memory_space<vmem>>, vector<8x32xf32>
    %c0_1 = arith.constant 0 : index
    %c0_2 = arith.constant 0 : index
    %1 = vector.load %arg2[%c0_1, %c0_2] : memref<8x32xf32, #tpu.memory_space<vmem>>, vector<8x32xf32>
    %cst = arith.constant 0.000000e+00 : f32
    %2 = vector.broadcast %cst : f32 to vector<8x32xf32>
    %3 = arith.maximumf %0, %2 : vector<8x32xf32>
    %cst_3 = arith.constant 0.000000e+00 : f32
    %4 = vector.broadcast %cst_3 : f32 to vector<8x32xf32>
    %5 = arith.maximumf %1, %4 : vector<8x32xf32>
    %c0_4 = arith.constant 0 : index
    %c0_5 = arith.constant 0 : index
    %6 = vector.load %arg3[%c0_4, %c0_5] : memref<8x8xf32, #tpu.memory_space<vmem>>, vector<8x8xf32>
    %c0_6 = arith.constant 0 : index
    %c0_7 = arith.constant 0 : index
    %c0_8 = arith.constant 0 : index
    %7 = vector.load %arg7[%c0_6, %c0_7, %c0_8] : memref<4x32x128xf32, #tpu.memory_space<vmem>>, vector<1x32x128xf32>
    %8 = vector.shape_cast %7 : vector<1x32x128xf32> to vector<32x128xf32>
    %cst_9 = arith.constant dense<0.000000e+00> : vector<8x128xf32>
    %9 = tpu.matmul %3, %8, %cst_9 {dimension_numbers = #tpu.dot_dimension_numbers<[1], [0], [0], [1], [0, 0, 1, 1], [], []>} : vector<8x32xf32>, vector<32x128xf32>, vector<8x128xf32> -> vector<8x128xf32>
    %c0_10 = arith.constant 0 : index
    %c0_11 = arith.constant 0 : index
    %c0_12 = arith.constant 0 : index
    %10 = vector.load %arg8[%c0_10, %c0_11, %c0_12] : memref<4x32x128xf32, #tpu.memory_space<vmem>>, vector<1x32x128xf32>
    %11 = vector.shape_cast %10 : vector<1x32x128xf32> to vector<32x128xf32>
    %cst_13 = arith.constant dense<0.000000e+00> : vector<8x128xf32>
    %12 = tpu.matmul %5, %11, %cst_13 {dimension_numbers = #tpu.dot_dimension_numbers<[1], [0], [0], [1], [0, 0, 1, 1], [], []>} : vector<8x32xf32>, vector<32x128xf32>, vector<8x128xf32> -> vector<8x128xf32>
    %13 = vector.shape_cast %9 : vector<8x128xf32> to vector<8x1x128xf32>
    %14 = vector.shape_cast %12 : vector<8x128xf32> to vector<1x8x128xf32>
    %15 = vector.broadcast %13 : vector<8x1x128xf32> to vector<8x8x128xf32>
    %16 = vector.broadcast %14 : vector<1x8x128xf32> to vector<8x8x128xf32>
    %17 = arith.addf %15, %16 : vector<8x8x128xf32>
    %c0_14 = arith.constant 0 : index
    %c0_15 = arith.constant 0 : index
    %c0_16 = arith.constant 0 : index
    %18 = vector.load %arg9[%c0_14, %c0_15, %c0_16] : memref<4x1x128xf32, #tpu.memory_space<vmem>>, vector<1x1x128xf32>
    %19 = vector.shape_cast %18 : vector<1x1x128xf32> to vector<1x128xf32>
    %20 = vector.shape_cast %19 : vector<1x128xf32> to vector<1x1x128xf32>
    %21 = vector.broadcast %20 : vector<1x1x128xf32> to vector<8x8x128xf32>
    %22 = arith.addf %17, %21 : vector<8x8x128xf32>
    %23 = arith.negf %22 : vector<8x8x128xf32>
    %24 = math.exp %23 : vector<8x8x128xf32>
    %cst_17 = arith.constant 1.000000e+00 : f32
    %25 = vector.broadcast %cst_17 : f32 to vector<8x8x128xf32>
    %26 = arith.addf %25, %24 : vector<8x8x128xf32>
    %27 = arith.divf %25, %26 : vector<8x8x128xf32>
    %cst_18 = arith.constant dense<0.000000e+00> : vector<8x8xf32>
    %28 = vector.multi_reduction <add>, %27, %cst_18 [2] : vector<8x8x128xf32> to vector<8x8xf32>
    %cst_19 = arith.constant 1.280000e+02 : f32
    %29 = vector.broadcast %cst_19 : f32 to vector<8x8xf32>
    %30 = arith.divf %28, %29 : vector<8x8xf32>
    %cst_20 = arith.constant 0.000000e+00 : f32
    %31 = vector.broadcast %cst_20 : f32 to vector<8x8xf32>
    %32 = arith.cmpf ogt, %6, %31 : vector<8x8xf32>
    %cst_21 = arith.constant 1.000000e+00 : f32
    %cst_22 = arith.constant 0.000000e+00 : f32
    %33 = vector.broadcast %cst_21 : f32 to vector<8x8xf32>
    %34 = vector.broadcast %cst_22 : f32 to vector<8x8xf32>
    %35 = arith.select %32, %33, %34 : vector<8x8xi1>, vector<8x8xf32>
    %cst_23 = arith.constant dense<0.000000e+00> : vector<8xf32>
    %36 = vector.multi_reduction <add>, %35, %cst_23 [1] : vector<8x8xf32> to vector<8xf32>
    %37 = vector.shape_cast %36 : vector<8xf32> to vector<8x1xf32>
    %cst_24 = arith.constant 0.000000e+00 : f32
    %38 = vector.broadcast %cst_24 : f32 to vector<8x1xf32>
    %39 = arith.cmpf ogt, %37, %38 : vector<8x1xf32>
    %cst_25 = arith.constant 1.000000e+00 : f32
    %40 = vector.broadcast %cst_25 : f32 to vector<8x1xf32>
    %41 = arith.maximumf %37, %40 : vector<8x1xf32>
    %cst_26 = arith.constant 5.000000e-01 : f32
    %42 = vector.broadcast %cst_26 : f32 to vector<8x1xf32>
    %43 = arith.divf %42, %41 : vector<8x1xf32>
    %cst_27 = arith.constant 0.000000e+00 : f32
    %44 = vector.broadcast %cst_27 : f32 to vector<8x1xf32>
    %45 = arith.select %39, %43, %44 : vector<8x1xi1>, vector<8x1xf32>
    %46 = vector.broadcast %45 : vector<8x1xf32> to vector<8x8xf32>
    %47 = arith.mulf %35, %46 : vector<8x8xf32>
    %48 = arith.mulf %47, %30 : vector<8x8xf32>
    %cst_28 = arith.constant dense<0.000000e+00> : vector<8x32xf32>
    %49 = tpu.matmul %48, %1, %cst_28 {dimension_numbers = #tpu.dot_dimension_numbers<[1], [0], [0], [1], [0, 0, 1, 1], [], []>} : vector<8x8xf32>, vector<8x32xf32>, vector<8x32xf32> -> vector<8x32xf32>
    %c0_29 = arith.constant 0 : index
    %c0_30 = arith.constant 0 : index
    %50 = vector.load %arg4[%c0_29, %c0_30] : memref<8x8xf32, #tpu.memory_space<vmem>>, vector<8x8xf32>
    %c1 = arith.constant 1 : index
    %c0_31 = arith.constant 0 : index
    %c0_32 = arith.constant 0 : index
    %51 = vector.load %arg7[%c1, %c0_31, %c0_32] : memref<4x32x128xf32, #tpu.memory_space<vmem>>, vector<1x32x128xf32>
    %52 = vector.shape_cast %51 : vector<1x32x128xf32> to vector<32x128xf32>
    %cst_33 = arith.constant dense<0.000000e+00> : vector<8x128xf32>
    %53 = tpu.matmul %3, %52, %cst_33 {dimension_numbers = #tpu.dot_dimension_numbers<[1], [0], [0], [1], [0, 0, 1, 1], [], []>} : vector<8x32xf32>, vector<32x128xf32>, vector<8x128xf32> -> vector<8x128xf32>
    %c1_34 = arith.constant 1 : index
    %c0_35 = arith.constant 0 : index
    %c0_36 = arith.constant 0 : index
    %54 = vector.load %arg8[%c1_34, %c0_35, %c0_36] : memref<4x32x128xf32, #tpu.memory_space<vmem>>, vector<1x32x128xf32>
    %55 = vector.shape_cast %54 : vector<1x32x128xf32> to vector<32x128xf32>
    %cst_37 = arith.constant dense<0.000000e+00> : vector<8x128xf32>
    %56 = tpu.matmul %5, %55, %cst_37 {dimension_numbers = #tpu.dot_dimension_numbers<[1], [0], [0], [1], [0, 0, 1, 1], [], []>} : vector<8x32xf32>, vector<32x128xf32>, vector<8x128xf32> -> vector<8x128xf32>
    %57 = vector.shape_cast %53 : vector<8x128xf32> to vector<8x1x128xf32>
    %58 = vector.shape_cast %56 : vector<8x128xf32> to vector<1x8x128xf32>
    %59 = vector.broadcast %57 : vector<8x1x128xf32> to vector<8x8x128xf32>
    %60 = vector.broadcast %58 : vector<1x8x128xf32> to vector<8x8x128xf32>
    %61 = arith.addf %59, %60 : vector<8x8x128xf32>
    %c1_38 = arith.constant 1 : index
    %c0_39 = arith.constant 0 : index
    %c0_40 = arith.constant 0 : index
    %62 = vector.load %arg9[%c1_38, %c0_39, %c0_40] : memref<4x1x128xf32, #tpu.memory_space<vmem>>, vector<1x1x128xf32>
    %63 = vector.shape_cast %62 : vector<1x1x128xf32> to vector<1x128xf32>
    %64 = vector.shape_cast %63 : vector<1x128xf32> to vector<1x1x128xf32>
    %65 = vector.broadcast %64 : vector<1x1x128xf32> to vector<8x8x128xf32>
    %66 = arith.addf %61, %65 : vector<8x8x128xf32>
    %67 = arith.negf %66 : vector<8x8x128xf32>
    %68 = math.exp %67 : vector<8x8x128xf32>
    %cst_41 = arith.constant 1.000000e+00 : f32
    %69 = vector.broadcast %cst_41 : f32 to vector<8x8x128xf32>
    %70 = arith.addf %69, %68 : vector<8x8x128xf32>
    %71 = arith.divf %69, %70 : vector<8x8x128xf32>
    %cst_42 = arith.constant dense<0.000000e+00> : vector<8x8xf32>
    %72 = vector.multi_reduction <add>, %71, %cst_42 [2] : vector<8x8x128xf32> to vector<8x8xf32>
    %cst_43 = arith.constant 1.280000e+02 : f32
    %73 = vector.broadcast %cst_43 : f32 to vector<8x8xf32>
    %74 = arith.divf %72, %73 : vector<8x8xf32>
    %cst_44 = arith.constant 0.000000e+00 : f32
    %75 = vector.broadcast %cst_44 : f32 to vector<8x8xf32>
    %76 = arith.cmpf ogt, %50, %75 : vector<8x8xf32>
    %cst_45 = arith.constant 1.000000e+00 : f32
    %cst_46 = arith.constant 0.000000e+00 : f32
    %77 = vector.broadcast %cst_45 : f32 to vector<8x8xf32>
    %78 = vector.broadcast %cst_46 : f32 to vector<8x8xf32>
    %79 = arith.select %76, %77, %78 : vector<8x8xi1>, vector<8x8xf32>
    %cst_47 = arith.constant dense<0.000000e+00> : vector<8xf32>
    %80 = vector.multi_reduction <add>, %79, %cst_47 [1] : vector<8x8xf32> to vector<8xf32>
    %81 = vector.shape_cast %80 : vector<8xf32> to vector<8x1xf32>
    %cst_48 = arith.constant 0.000000e+00 : f32
    %82 = vector.broadcast %cst_48 : f32 to vector<8x1xf32>
    %83 = arith.cmpf ogt, %81, %82 : vector<8x1xf32>
    %cst_49 = arith.constant 1.000000e+00 : f32
    %84 = vector.broadcast %cst_49 : f32 to vector<8x1xf32>
    %85 = arith.maximumf %81, %84 : vector<8x1xf32>
    %cst_50 = arith.constant 5.000000e-01 : f32
    %86 = vector.broadcast %cst_50 : f32 to vector<8x1xf32>
    %87 = arith.divf %86, %85 : vector<8x1xf32>
    %cst_51 = arith.constant 0.000000e+00 : f32
    %88 = vector.broadcast %cst_51 : f32 to vector<8x1xf32>
    %89 = arith.select %83, %87, %88 : vector<8x1xi1>, vector<8x1xf32>
    %90 = vector.broadcast %89 : vector<8x1xf32> to vector<8x8xf32>
    %91 = arith.mulf %79, %90 : vector<8x8xf32>
    %92 = arith.mulf %91, %74 : vector<8x8xf32>
    %cst_52 = arith.constant dense<0.000000e+00> : vector<8x32xf32>
    %93 = tpu.matmul %92, %1, %cst_52 {dimension_numbers = #tpu.dot_dimension_numbers<[1], [0], [0], [1], [0, 0, 1, 1], [], []>} : vector<8x8xf32>, vector<8x32xf32>, vector<8x32xf32> -> vector<8x32xf32>
    %94 = arith.addf %49, %93 : vector<8x32xf32>
    %c0_53 = arith.constant 0 : index
    %c0_54 = arith.constant 0 : index
    %95 = vector.load %arg5[%c0_53, %c0_54] : memref<8x8xf32, #tpu.memory_space<vmem>>, vector<8x8xf32>
    %c2 = arith.constant 2 : index
    %c0_55 = arith.constant 0 : index
    %c0_56 = arith.constant 0 : index
    %96 = vector.load %arg7[%c2, %c0_55, %c0_56] : memref<4x32x128xf32, #tpu.memory_space<vmem>>, vector<1x32x128xf32>
    %97 = vector.shape_cast %96 : vector<1x32x128xf32> to vector<32x128xf32>
    %cst_57 = arith.constant dense<0.000000e+00> : vector<8x128xf32>
    %98 = tpu.matmul %5, %97, %cst_57 {dimension_numbers = #tpu.dot_dimension_numbers<[1], [0], [0], [1], [0, 0, 1, 1], [], []>} : vector<8x32xf32>, vector<32x128xf32>, vector<8x128xf32> -> vector<8x128xf32>
    %c2_58 = arith.constant 2 : index
    %c0_59 = arith.constant 0 : index
    %c0_60 = arith.constant 0 : index
    %99 = vector.load %arg8[%c2_58, %c0_59, %c0_60] : memref<4x32x128xf32, #tpu.memory_space<vmem>>, vector<1x32x128xf32>
    %100 = vector.shape_cast %99 : vector<1x32x128xf32> to vector<32x128xf32>
    %cst_61 = arith.constant dense<0.000000e+00> : vector<8x128xf32>
    %101 = tpu.matmul %3, %100, %cst_61 {dimension_numbers = #tpu.dot_dimension_numbers<[1], [0], [0], [1], [0, 0, 1, 1], [], []>} : vector<8x32xf32>, vector<32x128xf32>, vector<8x128xf32> -> vector<8x128xf32>
    %102 = vector.shape_cast %98 : vector<8x128xf32> to vector<8x1x128xf32>
    %103 = vector.shape_cast %101 : vector<8x128xf32> to vector<1x8x128xf32>
    %104 = vector.broadcast %102 : vector<8x1x128xf32> to vector<8x8x128xf32>
    %105 = vector.broadcast %103 : vector<1x8x128xf32> to vector<8x8x128xf32>
    %106 = arith.addf %104, %105 : vector<8x8x128xf32>
    %c2_62 = arith.constant 2 : index
    %c0_63 = arith.constant 0 : index
    %c0_64 = arith.constant 0 : index
    %107 = vector.load %arg9[%c2_62, %c0_63, %c0_64] : memref<4x1x128xf32, #tpu.memory_space<vmem>>, vector<1x1x128xf32>
    %108 = vector.shape_cast %107 : vector<1x1x128xf32> to vector<1x128xf32>
    %109 = vector.shape_cast %108 : vector<1x128xf32> to vector<1x1x128xf32>
    %110 = vector.broadcast %109 : vector<1x1x128xf32> to vector<8x8x128xf32>
    %111 = arith.addf %106, %110 : vector<8x8x128xf32>
    %112 = arith.negf %111 : vector<8x8x128xf32>
    %113 = math.exp %112 : vector<8x8x128xf32>
    %cst_65 = arith.constant 1.000000e+00 : f32
    %114 = vector.broadcast %cst_65 : f32 to vector<8x8x128xf32>
    %115 = arith.addf %114, %113 : vector<8x8x128xf32>
    %116 = arith.divf %114, %115 : vector<8x8x128xf32>
    %cst_66 = arith.constant dense<0.000000e+00> : vector<8x8xf32>
    %117 = vector.multi_reduction <add>, %116, %cst_66 [2] : vector<8x8x128xf32> to vector<8x8xf32>
    %cst_67 = arith.constant 1.280000e+02 : f32
    %118 = vector.broadcast %cst_67 : f32 to vector<8x8xf32>
    %119 = arith.divf %117, %118 : vector<8x8xf32>
    %cst_68 = arith.constant 0.000000e+00 : f32
    %120 = vector.broadcast %cst_68 : f32 to vector<8x8xf32>
    %121 = arith.cmpf ogt, %95, %120 : vector<8x8xf32>
    %cst_69 = arith.constant 1.000000e+00 : f32
    %cst_70 = arith.constant 0.000000e+00 : f32
    %122 = vector.broadcast %cst_69 : f32 to vector<8x8xf32>
    %123 = vector.broadcast %cst_70 : f32 to vector<8x8xf32>
    %124 = arith.select %121, %122, %123 : vector<8x8xi1>, vector<8x8xf32>
    %cst_71 = arith.constant dense<0.000000e+00> : vector<8xf32>
    %125 = vector.multi_reduction <add>, %124, %cst_71 [1] : vector<8x8xf32> to vector<8xf32>
    %126 = vector.shape_cast %125 : vector<8xf32> to vector<8x1xf32>
    %cst_72 = arith.constant 0.000000e+00 : f32
    %127 = vector.broadcast %cst_72 : f32 to vector<8x1xf32>
    %128 = arith.cmpf ogt, %126, %127 : vector<8x1xf32>
    %cst_73 = arith.constant 1.000000e+00 : f32
    %129 = vector.broadcast %cst_73 : f32 to vector<8x1xf32>
    %130 = arith.maximumf %126, %129 : vector<8x1xf32>
    %cst_74 = arith.constant 5.000000e-01 : f32
    %131 = vector.broadcast %cst_74 : f32 to vector<8x1xf32>
    %132 = arith.divf %131, %130 : vector<8x1xf32>
    %cst_75 = arith.constant 0.000000e+00 : f32
    %133 = vector.broadcast %cst_75 : f32 to vector<8x1xf32>
    %134 = arith.select %128, %132, %133 : vector<8x1xi1>, vector<8x1xf32>
    %135 = vector.broadcast %134 : vector<8x1xf32> to vector<8x8xf32>
    %136 = arith.mulf %124, %135 : vector<8x8xf32>
    %137 = arith.mulf %136, %119 : vector<8x8xf32>
    %cst_76 = arith.constant dense<0.000000e+00> : vector<8x32xf32>
    %138 = tpu.matmul %137, %0, %cst_76 {dimension_numbers = #tpu.dot_dimension_numbers<[1], [0], [0], [1], [0, 0, 1, 1], [], []>} : vector<8x8xf32>, vector<8x32xf32>, vector<8x32xf32> -> vector<8x32xf32>
    %c0_77 = arith.constant 0 : index
    %c0_78 = arith.constant 0 : index
    %139 = vector.load %arg6[%c0_77, %c0_78] : memref<8x8xf32, #tpu.memory_space<vmem>>, vector<8x8xf32>
    %c3 = arith.constant 3 : index
    %c0_79 = arith.constant 0 : index
    %c0_80 = arith.constant 0 : index
    %140 = vector.load %arg7[%c3, %c0_79, %c0_80] : memref<4x32x128xf32, #tpu.memory_space<vmem>>, vector<1x32x128xf32>
    %141 = vector.shape_cast %140 : vector<1x32x128xf32> to vector<32x128xf32>
    %cst_81 = arith.constant dense<0.000000e+00> : vector<8x128xf32>
    %142 = tpu.matmul %5, %141, %cst_81 {dimension_numbers = #tpu.dot_dimension_numbers<[1], [0], [0], [1], [0, 0, 1, 1], [], []>} : vector<8x32xf32>, vector<32x128xf32>, vector<8x128xf32> -> vector<8x128xf32>
    %c3_82 = arith.constant 3 : index
    %c0_83 = arith.constant 0 : index
    %c0_84 = arith.constant 0 : index
    %143 = vector.load %arg8[%c3_82, %c0_83, %c0_84] : memref<4x32x128xf32, #tpu.memory_space<vmem>>, vector<1x32x128xf32>
    %144 = vector.shape_cast %143 : vector<1x32x128xf32> to vector<32x128xf32>
    %cst_85 = arith.constant dense<0.000000e+00> : vector<8x128xf32>
    %145 = tpu.matmul %3, %144, %cst_85 {dimension_numbers = #tpu.dot_dimension_numbers<[1], [0], [0], [1], [0, 0, 1, 1], [], []>} : vector<8x32xf32>, vector<32x128xf32>, vector<8x128xf32> -> vector<8x128xf32>
    %146 = vector.shape_cast %142 : vector<8x128xf32> to vector<8x1x128xf32>
    %147 = vector.shape_cast %145 : vector<8x128xf32> to vector<1x8x128xf32>
    %148 = vector.broadcast %146 : vector<8x1x128xf32> to vector<8x8x128xf32>
    %149 = vector.broadcast %147 : vector<1x8x128xf32> to vector<8x8x128xf32>
    %150 = arith.addf %148, %149 : vector<8x8x128xf32>
    %c3_86 = arith.constant 3 : index
    %c0_87 = arith.constant 0 : index
    %c0_88 = arith.constant 0 : index
    %151 = vector.load %arg9[%c3_86, %c0_87, %c0_88] : memref<4x1x128xf32, #tpu.memory_space<vmem>>, vector<1x1x128xf32>
    %152 = vector.shape_cast %151 : vector<1x1x128xf32> to vector<1x128xf32>
    %153 = vector.shape_cast %152 : vector<1x128xf32> to vector<1x1x128xf32>
    %154 = vector.broadcast %153 : vector<1x1x128xf32> to vector<8x8x128xf32>
    %155 = arith.addf %150, %154 : vector<8x8x128xf32>
    %156 = arith.negf %155 : vector<8x8x128xf32>
    %157 = math.exp %156 : vector<8x8x128xf32>
    %cst_89 = arith.constant 1.000000e+00 : f32
    %158 = vector.broadcast %cst_89 : f32 to vector<8x8x128xf32>
    %159 = arith.addf %158, %157 : vector<8x8x128xf32>
    %160 = arith.divf %158, %159 : vector<8x8x128xf32>
    %cst_90 = arith.constant dense<0.000000e+00> : vector<8x8xf32>
    %161 = vector.multi_reduction <add>, %160, %cst_90 [2] : vector<8x8x128xf32> to vector<8x8xf32>
    %cst_91 = arith.constant 1.280000e+02 : f32
    %162 = vector.broadcast %cst_91 : f32 to vector<8x8xf32>
    %163 = arith.divf %161, %162 : vector<8x8xf32>
    %cst_92 = arith.constant 0.000000e+00 : f32
    %164 = vector.broadcast %cst_92 : f32 to vector<8x8xf32>
    %165 = arith.cmpf ogt, %139, %164 : vector<8x8xf32>
    %cst_93 = arith.constant 1.000000e+00 : f32
    %cst_94 = arith.constant 0.000000e+00 : f32
    %166 = vector.broadcast %cst_93 : f32 to vector<8x8xf32>
    %167 = vector.broadcast %cst_94 : f32 to vector<8x8xf32>
    %168 = arith.select %165, %166, %167 : vector<8x8xi1>, vector<8x8xf32>
    %cst_95 = arith.constant dense<0.000000e+00> : vector<8xf32>
    %169 = vector.multi_reduction <add>, %168, %cst_95 [1] : vector<8x8xf32> to vector<8xf32>
    %170 = vector.shape_cast %169 : vector<8xf32> to vector<8x1xf32>
    %cst_96 = arith.constant 0.000000e+00 : f32
    %171 = vector.broadcast %cst_96 : f32 to vector<8x1xf32>
    %172 = arith.cmpf ogt, %170, %171 : vector<8x1xf32>
    %cst_97 = arith.constant 1.000000e+00 : f32
    %173 = vector.broadcast %cst_97 : f32 to vector<8x1xf32>
    %174 = arith.maximumf %170, %173 : vector<8x1xf32>
    %cst_98 = arith.constant 5.000000e-01 : f32
    %175 = vector.broadcast %cst_98 : f32 to vector<8x1xf32>
    %176 = arith.divf %175, %174 : vector<8x1xf32>
    %cst_99 = arith.constant 0.000000e+00 : f32
    %177 = vector.broadcast %cst_99 : f32 to vector<8x1xf32>
    %178 = arith.select %172, %176, %177 : vector<8x1xi1>, vector<8x1xf32>
    %179 = vector.broadcast %178 : vector<8x1xf32> to vector<8x8xf32>
    %180 = arith.mulf %168, %179 : vector<8x8xf32>
    %181 = arith.mulf %180, %163 : vector<8x8xf32>
    %cst_100 = arith.constant dense<0.000000e+00> : vector<8x32xf32>
    %182 = tpu.matmul %181, %0, %cst_100 {dimension_numbers = #tpu.dot_dimension_numbers<[1], [0], [0], [1], [0, 0, 1, 1], [], []>} : vector<8x8xf32>, vector<8x32xf32>, vector<8x32xf32> -> vector<8x32xf32>
    %183 = arith.addf %138, %182 : vector<8x32xf32>
    %cst_101 = arith.constant 0.000000e+00 : f32
    %184 = vector.broadcast %cst_101 : f32 to vector<8x32xf32>
    %185 = arith.maximumf %94, %184 : vector<8x32xf32>
    %c0_102 = arith.constant 0 : index
    %c0_103 = arith.constant 0 : index
    %c0_104 = arith.constant 0 : index
    %186 = vector.load %arg10[%c0_102, %c0_103, %c0_104] : memref<2x32x128xf32, #tpu.memory_space<vmem>>, vector<1x32x128xf32>
    %187 = vector.shape_cast %186 : vector<1x32x128xf32> to vector<32x128xf32>
    %cst_105 = arith.constant dense<0.000000e+00> : vector<8x128xf32>
    %188 = tpu.matmul %185, %187, %cst_105 {dimension_numbers = #tpu.dot_dimension_numbers<[1], [0], [0], [1], [0, 0, 1, 1], [], []>} : vector<8x32xf32>, vector<32x128xf32>, vector<8x128xf32> -> vector<8x128xf32>
    %c0_106 = arith.constant 0 : index
    %c0_107 = arith.constant 0 : index
    %c0_108 = arith.constant 0 : index
    %189 = vector.load %arg12[%c0_106, %c0_107, %c0_108] : memref<2x1x128xf32, #tpu.memory_space<vmem>>, vector<1x1x128xf32>
    %190 = vector.shape_cast %189 : vector<1x1x128xf32> to vector<1x128xf32>
    %191 = vector.broadcast %190 : vector<1x128xf32> to vector<8x128xf32>
    %192 = arith.addf %188, %191 : vector<8x128xf32>
    %c0_109 = arith.constant 0 : index
    %c0_110 = arith.constant 0 : index
    %c0_111 = arith.constant 0 : index
    %193 = vector.load %arg11[%c0_109, %c0_110, %c0_111] : memref<2x32x128xf32, #tpu.memory_space<vmem>>, vector<1x32x128xf32>
    %194 = vector.shape_cast %193 : vector<1x32x128xf32> to vector<32x128xf32>
    %cst_112 = arith.constant dense<0.000000e+00> : vector<8x128xf32>
    %195 = tpu.matmul %3, %194, %cst_112 {dimension_numbers = #tpu.dot_dimension_numbers<[1], [0], [0], [1], [0, 0, 1, 1], [], []>} : vector<8x32xf32>, vector<32x128xf32>, vector<8x128xf32> -> vector<8x128xf32>
    %196 = arith.addf %192, %195 : vector<8x128xf32>
    %c0_113 = arith.constant 0 : index
    %c0_114 = arith.constant 0 : index
    %c0_115 = arith.constant 0 : index
    %197 = vector.load %arg13[%c0_113, %c0_114, %c0_115] : memref<2x1x128xf32, #tpu.memory_space<vmem>>, vector<1x1x128xf32>
    %198 = vector.shape_cast %197 : vector<1x1x128xf32> to vector<1x128xf32>
    %199 = vector.broadcast %198 : vector<1x128xf32> to vector<8x128xf32>
    %200 = arith.addf %196, %199 : vector<8x128xf32>
    %cst_116 = arith.constant 0.000000e+00 : f32
    %201 = vector.broadcast %cst_116 : f32 to vector<8x32xf32>
    %202 = arith.maximumf %183, %201 : vector<8x32xf32>
    %c1_117 = arith.constant 1 : index
    %c0_118 = arith.constant 0 : index
    %c0_119 = arith.constant 0 : index
    %203 = vector.load %arg10[%c1_117, %c0_118, %c0_119] : memref<2x32x128xf32, #tpu.memory_space<vmem>>, vector<1x32x128xf32>
    %204 = vector.shape_cast %203 : vector<1x32x128xf32> to vector<32x128xf32>
    %cst_120 = arith.constant dense<0.000000e+00> : vector<8x128xf32>
    %205 = tpu.matmul %202, %204, %cst_120 {dimension_numbers = #tpu.dot_dimension_numbers<[1], [0], [0], [1], [0, 0, 1, 1], [], []>} : vector<8x32xf32>, vector<32x128xf32>, vector<8x128xf32> -> vector<8x128xf32>
    %c1_121 = arith.constant 1 : index
    %c0_122 = arith.constant 0 : index
    %c0_123 = arith.constant 0 : index
    %206 = vector.load %arg12[%c1_121, %c0_122, %c0_123] : memref<2x1x128xf32, #tpu.memory_space<vmem>>, vector<1x1x128xf32>
    %207 = vector.shape_cast %206 : vector<1x1x128xf32> to vector<1x128xf32>
    %208 = vector.broadcast %207 : vector<1x128xf32> to vector<8x128xf32>
    %209 = arith.addf %205, %208 : vector<8x128xf32>
    %c1_124 = arith.constant 1 : index
    %c0_125 = arith.constant 0 : index
    %c0_126 = arith.constant 0 : index
    %210 = vector.load %arg11[%c1_124, %c0_125, %c0_126] : memref<2x32x128xf32, #tpu.memory_space<vmem>>, vector<1x32x128xf32>
    %211 = vector.shape_cast %210 : vector<1x32x128xf32> to vector<32x128xf32>
    %cst_127 = arith.constant dense<0.000000e+00> : vector<8x128xf32>
    %212 = tpu.matmul %5, %211, %cst_127 {dimension_numbers = #tpu.dot_dimension_numbers<[1], [0], [0], [1], [0, 0, 1, 1], [], []>} : vector<8x32xf32>, vector<32x128xf32>, vector<8x128xf32> -> vector<8x128xf32>
    %213 = arith.addf %209, %212 : vector<8x128xf32>
    %c1_128 = arith.constant 1 : index
    %c0_129 = arith.constant 0 : index
    %c0_130 = arith.constant 0 : index
    %214 = vector.load %arg13[%c1_128, %c0_129, %c0_130] : memref<2x1x128xf32, #tpu.memory_space<vmem>>, vector<1x1x128xf32>
    %215 = vector.shape_cast %214 : vector<1x1x128xf32> to vector<1x128xf32>
    %216 = vector.broadcast %215 : vector<1x128xf32> to vector<8x128xf32>
    %217 = arith.addf %213, %216 : vector<8x128xf32>
    %218 = tpu.concatenate %200, %217 in 0 : vector<8x128xf32>, vector<8x128xf32> -> vector<16x128xf32>
    %c0_131 = arith.constant 0 : index
    %c0_132 = arith.constant 0 : index
    %219 = vector.load %arg14[%c0_131, %c0_132] : memref<16x128xf32, #tpu.memory_space<vmem>>, vector<16x128xf32>
    tpu.vector_store %arg14[%c0_131, %c0_132], %218 {strides = array<i32>} : memref<16x128xf32, #tpu.memory_space<vmem>>, vector<16x128xf32>,
    return
  }
  func.func @transform_0(%arg0: i32) -> (i32, i32) {
    %c0_i32 = arith.constant 0 : i32
    %c0_i32_0 = arith.constant 0 : i32
    %c0_i32_1 = arith.constant 0 : i32
    return %c0_i32, %c0_i32_0 : i32, i32
  }
  func.func @transform_1(%arg0: i32) -> (i32, i32) {
    %c0_i32 = arith.constant 0 : i32
    %c0_i32_0 = arith.constant 0 : i32
    %c0_i32_1 = arith.constant 0 : i32
    return %c0_i32, %c0_i32_0 : i32, i32
  }
  func.func @transform_2(%arg0: i32) -> (i32, i32) {
    %c0_i32 = arith.constant 0 : i32
    %c0_i32_0 = arith.constant 0 : i32
    %c0_i32_1 = arith.constant 0 : i32
    return %c0_i32, %c0_i32_0 : i32, i32
  }
  func.func @transform_3(%arg0: i32) -> (i32, i32) {
    %c0_i32 = arith.constant 0 : i32
    %c0_i32_0 = arith.constant 0 : i32
    %c0_i32_1 = arith.constant 0 : i32
    return %c0_i32, %c0_i32_0 : i32, i32
  }
  func.func @transform_4(%arg0: i32) -> (i32, i32) {
    %c0_i32 = arith.constant 0 : i32
    %c0_i32_0 = arith.constant 0 : i32
    %c0_i32_1 = arith.constant 0 : i32
    return %c0_i32, %c0_i32_0 : i32, i32
  }
  func.func @transform_5(%arg0: i32) -> (i32, i32) {
    %c0_i32 = arith.constant 0 : i32
    %c0_i32_0 = arith.constant 0 : i32
    %c0_i32_1 = arith.constant 0 : i32
    return %c0_i32, %c0_i32_0 : i32, i32
  }
  func.func @transform_6(%arg0: i32) -> (i32, i32, i32) {
    %c0_i32 = arith.constant 0 : i32
    %c0_i32_0 = arith.constant 0 : i32
    %c0_i32_1 = arith.constant 0 : i32
    %c0_i32_2 = arith.constant 0 : i32
    return %c0_i32, %c0_i32_0, %c0_i32_1 : i32, i32, i32
  }
  func.func @transform_7(%arg0: i32) -> (i32, i32, i32) {
    %c0_i32 = arith.constant 0 : i32
    %c0_i32_0 = arith.constant 0 : i32
    %c0_i32_1 = arith.constant 0 : i32
    %c0_i32_2 = arith.constant 0 : i32
    return %c0_i32, %c0_i32_0, %c0_i32_1 : i32, i32, i32
  }
  func.func @transform_8(%arg0: i32) -> (i32, i32, i32) {
    %c0_i32 = arith.constant 0 : i32
    %c0_i32_0 = arith.constant 0 : i32
    %c0_i32_1 = arith.constant 0 : i32
    %c0_i32_2 = arith.constant 0 : i32
    return %c0_i32, %c0_i32_0, %c0_i32_1 : i32, i32, i32
  }
  func.func @transform_9(%arg0: i32) -> (i32, i32, i32) {
    %c0_i32 = arith.constant 0 : i32
    %c0_i32_0 = arith.constant 0 : i32
    %c0_i32_1 = arith.constant 0 : i32
    %c0_i32_2 = arith.constant 0 : i32
    return %c0_i32, %c0_i32_0, %c0_i32_1 : i32, i32, i32
  }
  func.func @transform_10(%arg0: i32) -> (i32, i32, i32) {
    %c0_i32 = arith.constant 0 : i32
    %c0_i32_0 = arith.constant 0 : i32
    %c0_i32_1 = arith.constant 0 : i32
    %c0_i32_2 = arith.constant 0 : i32
    return %c0_i32, %c0_i32_0, %c0_i32_1 : i32, i32, i32
  }
  func.func @transform_11(%arg0: i32) -> (i32, i32, i32) {
    %c0_i32 = arith.constant 0 : i32
    %c0_i32_0 = arith.constant 0 : i32
    %c0_i32_1 = arith.constant 0 : i32
    %c0_i32_2 = arith.constant 0 : i32
    return %c0_i32, %c0_i32_0, %c0_i32_1 : i32, i32, i32
  }
  func.func @transform_12(%arg0: i32) -> (i32, i32, i32) {
    %c0_i32 = arith.constant 0 : i32
    %c0_i32_0 = arith.constant 0 : i32
    %c0_i32_1 = arith.constant 0 : i32
    %c0_i32_2 = arith.constant 0 : i32
    return %c0_i32, %c0_i32_0, %c0_i32_1 : i32, i32, i32
  }
  func.func @transform_13(%arg0: i32) -> (i32, i32) {
    %c0_i32 = arith.constant 0 : i32
    %c0_i32_0 = arith.constant 0 : i32
    %c0_i32_1 = arith.constant 0 : i32
    return %c0_i32, %c0_i32_0 : i32, i32
  }
}

</mosaic_0001>

<llo_original>
// kernel: _msdn_step.1
$region0: #{_msdn_step.1}
  #allocation0 [shape = 'u32[]', space=smem, size = 0x4, offset = 0x4, fixed_abs, tag = 'smem constant byte address 0x4 - core index']
  #allocation1 [shape = 'u32[72,128]{1,0:T(1,128)}', space=vmem, size = 0x9000, scoped, tag = 'internal scratch']
  %s0 = inlined_call_operand.hbm [shape: f32[8,32], index: 0, kind: input, shape index: {}]
  %s1 = inlined_call_operand.hbm [shape: f32[8,32], index: 1, kind: input, shape index: {}]
  %s2 = inlined_call_operand.hbm [shape: f32[8,8], index: 2, kind: input, shape index: {}]
  %s3 = inlined_call_operand.hbm [shape: f32[8,8], index: 3, kind: input, shape index: {}]
  %s4 = inlined_call_operand.hbm [shape: f32[8,8], index: 4, kind: input, shape index: {}]
  %s5 = inlined_call_operand.hbm [shape: f32[8,8], index: 5, kind: input, shape index: {}]
  %s6 = inlined_call_operand.hbm [shape: f32[4,32,128], index: 6, kind: input, shape index: {}]
  %s7 = inlined_call_operand.hbm [shape: f32[4,32,128], index: 7, kind: input, shape index: {}]
  %s8 = inlined_call_operand.vmem [shape: f32[4,1,128], index: 8, kind: input, shape index: {}]
  %s9 = inlined_call_operand.hbm [shape: f32[2,32,128], index: 9, kind: input, shape index: {}]
  %s10 = inlined_call_operand.hbm [shape: f32[2,32,128], index: 10, kind: input, shape index: {}]
  %s11 = inlined_call_operand.vmem [shape: f32[2,1,128], index: 11, kind: input, shape index: {}]
  %s12 = inlined_call_operand.vmem [shape: f32[2,1,128], index: 12, kind: input, shape index: {}]
  %s13 = inlined_call_operand.vmem [shape: f32[16,128], index: 13, kind: output, shape index: {}]
  %s14 = sld [smem:[#allocation0]]
  $region102: #{_msdn_step.1} parent=0
    _
  %s16 = ssub.s32 1, %s14
  %s17 = scalar_select 0, %s16, %s14
  $region1: #{_msdn_step.1} parent=0
    #allocation2 [shape = 'u8[4096]{0}', space=vmem, size = 0x1000, scoped, tag = 'input window, operand 0, single buffered']
    #allocation3 [shape = 's32[1]{0}', space=sflag, size = 0x4, scoped, tag = 'scoped memory for _msdn_step.1']
    #allocation4 [shape = 'u8[4096]{0}', space=vmem, size = 0x1000, scoped, tag = 'input window, operand 1, single buffered']
    #allocation5 [shape = 's32[1]{0}', space=sflag, size = 0x4, scoped, tag = 'scoped memory for _msdn_step.1']
    #allocation6 [shape = 'u8[4096]{0}', space=vmem, size = 0x1000, scoped, tag = 'input window, operand 2, single buffered']
    #allocation7 [shape = 'u8[4096]{0}', space=vmem, size = 0x1000, scoped, tag = 'input window, operand 3, single buffered']
    #allocation8 [shape = 's32[1]{0}', space=sflag, size = 0x4, scoped, tag = 'scoped memory for _msdn_step.1']
    #allocation9 [shape = 'u8[4096]{0}', space=vmem, size = 0x1000, scoped, tag = 'input window, operand 4, single buffered']
    #allocation10 [shape = 'u8[4096]{0}', space=vmem, size = 0x1000, scoped, tag = 'input window, operand 5, single buffered']
    #allocation11 [shape = 's32[1]{0}', space=sflag, size = 0x4, scoped, tag = 'scoped memory for _msdn_step.1']
    #allocation12 [shape = 'u8[65536]{0}', space=vmem, size = 0x10000, scoped, tag = 'input window, operand 6, single buffered']
    #allocation13 [shape = 'u8[65536]{0}', space=vmem, size = 0x10000, scoped, tag = 'input window, operand 7, single buffered']
    #allocation14 [shape = 's32[1]{0}', space=sflag, size = 0x4, scoped, tag = 'scoped memory for _msdn_step.1']
    #allocation15 [shape = 'u8[32768]{0}', space=vmem, size = 0x8000, scoped, tag = 'input window, operand 9, single buffered']
    #allocation16 [shape = 'u8[32768]{0}', space=vmem, size = 0x8000, scoped, tag = 'input window, operand 10, single buffered']
    #allocation17 [shape = 's32[1]{0}', space=sflag, size = 0x4, scoped, tag = 'scoped memory for _msdn_step.1']
    %18 = vsyncpa [#allocation3], 0
    %19 = vsyncpa [#allocation5], 0
    %20 = vsyncpa [#allocation8], 0
    %21 = vsyncpa [#allocation11], 0
    %22 = vsyncpa [#allocation14], 0
    %23 = vsyncpa [#allocation17], 0
    // Predicated region
    $region2: #{_msdn_step.1} parent=1 // pred_check
      _
    $region3: #{_msdn_step.1} parent=1 // pred_check_branch
      %25 = sbr.rel (0) target = $region5
    $region4: #{_msdn_step.1} parent=1 // pred_region
      %27 = vsyncadd [#allocation3], 0
      %s29 = sshll.u32 %s0, 4
      %s30 = int_to_ptr.hbm [resolvable:$true] %s29
      %s31 = sshll.u32 [#allocation2], 4
      %s32 = int_to_ptr.vmem [resolvable:$true] %s31
      %34 = dma.hbm_to_vmem [thread:$0]  %s30, 128, %s32, [#allocation3]
    $region5: #{_msdn_step.1} parent=1 // pred_fallthru
      _
    // Predicated region
    $region6: #{_msdn_step.1} parent=1 // pred_check
      _
    $region7: #{_msdn_step.1} parent=1 // pred_check_branch
      %36 = sbr.rel (0) target = $region9
    $region8: #{_msdn_step.1} parent=1 // pred_region
      %38 = vsyncadd [#allocation5], 0
      %s40 = sshll.u32 %s1, 4
      %s41 = int_to_ptr.hbm [resolvable:$true] %s40
      %s42 = sshll.u32 [#allocation4], 4
      %s43 = int_to_ptr.vmem [resolvable:$true] %s42
      %45 = dma.hbm_to_vmem [thread:$0]  %s41, 128, %s43, [#allocation5]
    $region9: #{_msdn_step.1} parent=1 // pred_fallthru
      _
    // Predicated region
    $region10: #{_msdn_step.1} parent=1 // pred_check
      _
    $region11: #{_msdn_step.1} parent=1 // pred_check_branch
      %47 = sbr.rel (0) target = $region13
    $region12: #{_msdn_step.1} parent=1 // pred_region
      %49 = vsyncadd [#allocation5], 0
      %s51 = sshll.u32 %s2, 4
      %s52 = int_to_ptr.hbm [resolvable:$true] %s51
      %s53 = sshll.u32 [#allocation6], 4
      %s54 = int_to_ptr.vmem [resolvable:$true] %s53
      %56 = dma.hbm_to_vmem [thread:$0]  %s52, 128, %s54, [#allocation5]
    $region13: #{_msdn_step.1} parent=1 // pred_fallthru
      _
    // Predicated region
    $region14: #{_msdn_step.1} parent=1 // pred_check
      _
    $region15: #{_msdn_step.1} parent=1 // pred_check_branch
      %58 = sbr.rel (0) target = $region17
    $region16: #{_msdn_step.1} parent=1 // pred_region
      %60 = vsyncadd [#allocation8], 0
      %s62 = sshll.u32 %s3, 4
      %s63 = int_to_ptr.hbm [resolvable:$true] %s62
      %s64 = sshll.u32 [#allocation7], 4
      %s65 = int_to_ptr.vmem [resolvable:$true] %s64
      %67 = dma.hbm_to_vmem [thread:$0]  %s63, 128, %s65, [#allocation8]
    $region17: #{_msdn_step.1} parent=1 // pred_fallthru
      _
    // Predicated region
    $region18: #{_msdn_step.1} parent=1 // pred_check
      _
    $region19: #{_msdn_step.1} parent=1 // pred_check_branch
      %69 = sbr.rel (0) target = $region21
    $region20: #{_msdn_step.1} parent=1 // pred_region
      %71 = vsyncadd [#allocation8], 0
      %s73 = sshll.u32 %s4, 4
      %s74 = int_to_ptr.hbm [resolvable:$true] %s73
      %s75 = sshll.u32 [#allocation9], 4
      %s76 = int_to_ptr.vmem [resolvable:$true] %s75
      %78 = dma.hbm_to_vmem [thread:$0]  %s74, 128, %s76, [#allocation8]
    $region21: #{_msdn_step.1} parent=1 // pred_fallthru
      _
    // Predicated region
    $region22: #{_msdn_step.1} parent=1 // pred_check
      _
    $region23: #{_msdn_step.1} parent=1 // pred_check_branch
      %80 = sbr.rel (0) target = $region25
    $region24: #{_msdn_step.1} parent=1 // pred_region
      %82 = vsyncadd [#allocation11], 0
      %s84 = sshll.u32 %s5, 4
      %s85 = int_to_ptr.hbm [resolvable:$true] %s84
      %s86 = sshll.u32 [#allocation10], 4
      %s87 = int_to_ptr.vmem [resolvable:$true] %s86
      %89 = dma.hbm_to_vmem [thread:$0]  %s85, 128, %s87, [#allocation11]
    $region25: #{_msdn_step.1} parent=1 // pred_fallthru
      _
    // Predicated region
    $region26: #{_msdn_step.1} parent=1 // pred_check
      _
    $region27: #{_msdn_step.1} parent=1 // pred_check_branch
      %91 = sbr.rel (0) target = $region29
    $region28: #{_msdn_step.1} parent=1 // pred_region
      %93 = vsyncadd [#allocation11], 0
      %s94 = sshll.u32 %s6, 4
      %s95 = int_to_ptr.hbm [resolvable:$true] %s94
      %s96 = sshll.u32 [#allocation12], 4
      %s97 = int_to_ptr.vmem [resolvable:$true] %s96
      %102 = dma.hbm_to_vmem [thread:$0]  %s95, 2048, %s97, [#allocation11], 128, 128, 8
    $region29: #{_msdn_step.1} parent=1 // pred_fallthru
      _
    // Predicated region
    $region30: #{_msdn_step.1} parent=1 // pred_check
      _
    $region31: #{_msdn_step.1} parent=1 // pred_check_branch
      %104 = sbr.rel (0) target = $region33
    $region32: #{_msdn_step.1} parent=1 // pred_region
      %106 = vsyncadd [#allocation14], 0
      %s107 = sshll.u32 %s7, 4
      %s108 = int_to_ptr.hbm [resolvable:$true] %s107
      %s109 = sshll.u32 [#allocation13], 4
      %s110 = int_to_ptr.vmem [resolvable:$true] %s109
      %115 = dma.hbm_to_vmem [thread:$0]  %s108, 2048, %s110, [#allocation14], 128, 128, 8
    $region33: #{_msdn_step.1} parent=1 // pred_fallthru
      _
    // Predicated region
    $region34: #{_msdn_step.1} parent=1 // pred_check
      _
    $region35: #{_msdn_step.1} parent=1 // pred_check_branch
      %117 = sbr.rel (0) target = $region37
    $region36: #{_msdn_step.1} parent=1 // pred_region
      _
    $region37: #{_msdn_step.1} parent=1 // pred_fallthru
      _
    // Predicated region
    $region38: #{_msdn_step.1} parent=1 // pred_check
      _
    $region39: #{_msdn_step.1} parent=1 // pred_check_branch
      %119 = sbr.rel (0) target = $region41
    $region40: #{_msdn_step.1} parent=1 // pred_region
      %121 = vsyncadd [#allocation14], 0
      %s122 = sshll.u32 %s9, 4
      %s123 = int_to_ptr.hbm [resolvable:$true] %s122
      %s124 = sshll.u32 [#allocation15], 4
      %s125 = int_to_ptr.vmem [resolvable:$true] %s124
      %130 = dma.hbm_to_vmem [thread:$0]  %s123, 1024, %s125, [#allocation14], 128, 128, 8
    $region41: #{_msdn_step.1} parent=1 // pred_fallthru
      _
    // Predicated region
    $region42: #{_msdn_step.1} parent=1 // pred_check
      _
    $region43: #{_msdn_step.1} parent=1 // pred_check_branch
      %132 = sbr.rel (0) target = $region45
    $region44: #{_msdn_step.1} parent=1 // pred_region
      %134 = vsyncadd [#allocation17], 0
      %s135 = sshll.u32 %s10, 4
      %s136 = int_to_ptr.hbm [resolvable:$true] %s135
      %s137 = sshll.u32 [#allocation16], 4
      %s138 = int_to_ptr.vmem [resolvable:$true] %s137
      %143 = dma.hbm_to_vmem [thread:$0]  %s136, 1024, %s138, [#allocation17], 128, 128, 8
    $region45: #{_msdn_step.1} parent=1 // pred_fallthru
      _
    // Predicated region
    $region46: #{_msdn_step.1} parent=1 // pred_check
      _
    $region47: #{_msdn_step.1} parent=1 // pred_check_branch
      %145 = sbr.rel (0) target = $region49
    $region48: #{_msdn_step.1} parent=1 // pred_region
      _
    $region49: #{_msdn_step.1} parent=1 // pred_fallthru
      _
    // Predicated region
    $region50: #{_msdn_step.1} parent=1 // pred_check
      _
    $region51: #{_msdn_step.1} parent=1 // pred_check_branch
      %147 = sbr.rel (0) target = $region53
    $region52: #{_msdn_step.1} parent=1 // pred_region
      _
    $region53: #{_msdn_step.1} parent=1 // pred_fallthru
      _
    // Predicated region
    $region54: #{_msdn_step.1} parent=1 // pred_check
      _
    $region55: #{_msdn_step.1} parent=1 // pred_check_branch
      %149 = sbr.rel (0) target = $region57
    $region56: #{_msdn_step.1} parent=1 // pred_region
      %151 = dma.done [#allocation3], 128
    $region57: #{_msdn_step.1} parent=1 // pred_fallthru
      _
    // Predicated region
    $region58: #{_msdn_step.1} parent=1 // pred_check
      _
    $region59: #{_msdn_step.1} parent=1 // pred_check_branch
      %153 = sbr.rel (0) target = $region61
    $region60: #{_msdn_step.1} parent=1 // pred_region
      %155 = dma.done [#allocation5], 128
    $region61: #{_msdn_step.1} parent=1 // pred_fallthru
      _
    // Predicated region
    $region62: #{_msdn_step.1} parent=1 // pred_check
      _
    $region63: #{_msdn_step.1} parent=1 // pred_check_branch
      %157 = sbr.rel (0) target = $region65
    $region64: #{_msdn_step.1} parent=1 // pred_region
      %159 = dma.done [#allocation5], 128
    $region65: #{_msdn_step.1} parent=1 // pred_fallthru
      _
    // Predicated region
    $region66: #{_msdn_step.1} parent=1 // pred_check
      _
    $region67: #{_msdn_step.1} parent=1 // pred_check_branch
      %161 = sbr.rel (0) target = $region69
    $region68: #{_msdn_step.1} parent=1 // pred_region
      %163 = dma.done [#allocation8], 128
    $region69: #{_msdn_step.1} parent=1 // pred_fallthru
      _
    // Predicated region
    $region70: #{_msdn_step.1} parent=1 // pred_check
      _
    $region71: #{_msdn_step.1} parent=1 // pred_check_branch
      %165 = sbr.rel (0) target = $region73
    $region72: #{_msdn_step.1} parent=1 // pred_region
      %167 = dma.done [#allocation8], 128
    $region73: #{_msdn_step.1} parent=1 // pred_fallthru
      _
    // Predicated region
    $region74: #{_msdn_step.1} parent=1 // pred_check
      _
    $region75: #{_msdn_step.1} parent=1 // pred_check_branch
      %169 = sbr.rel (0) target = $region77
    $region76: #{_msdn_step.1} parent=1 // pred_region
      %171 = dma.done [#allocation11], 128
    $region77: #{_msdn_step.1} parent=1 // pred_fallthru
      _
    // Predicated region
    $region78: #{_msdn_step.1} parent=1 // pred_check
      _
    $region79: #{_msdn_step.1} parent=1 // pred_check_branch
      %173 = sbr.rel (0) target = $region81
    $region80: #{_msdn_step.1} parent=1 // pred_region
      %175 = dma.done [#allocation11], 2048
    $region81: #{_msdn_step.1} parent=1 // pred_fallthru
      _
    // Predicated region
    $region82: #{_msdn_step.1} parent=1 // pred_check
      _
    $region83: #{_msdn_step.1} parent=1 // pred_check_branch
      %177 = sbr.rel (0) target = $region85
    $region84: #{_msdn_step.1} parent=1 // pred_region
      %179 = dma.done [#allocation14], 2048
    $region85: #{_msdn_step.1} parent=1 // pred_fallthru
      _
    // Predicated region
    $region86: #{_msdn_step.1} parent=1 // pred_check
      _
    $region87: #{_msdn_step.1} parent=1 // pred_check_branch
      %181 = sbr.rel (0) target = $region89
    $region88: #{_msdn_step.1} parent=1 // pred_region
      %183 = dma.done [#allocation14], 1024
    $region89: #{_msdn_step.1} parent=1 // pred_fallthru
      _
    // Predicated region
    $region90: #{_msdn_step.1} parent=1 // pred_check
      _
    $region91: #{_msdn_step.1} parent=1 // pred_check_branch
      %185 = sbr.rel (0) target = $region93
    $region92: #{_msdn_step.1} parent=1 // pred_region
      %187 = dma.done [#allocation17], 1024
    $region93: #{_msdn_step.1} parent=1 // pred_fallthru
      _
    %v188 = vld [vmem:[#allocation2] sm:$0xff]
    %v189 = vld [vmem:[#allocation4] sm:$0xff]
    %v190 = vmax.f32 %v188, 0.0
    %v191 = vmax.f32 %v189, 0.0
    %v192 = vld [vmem:[#allocation6] sm:$0xff]
    %v193 = vld [vmem:[#allocation12] sm:$0xff]
    %v194 = vld [vmem:[#allocation12 + $0x8] sm:$0xff]
    %v195 = vld [vmem:[#allocation12 + $0x10] sm:$0xff]
    %v196 = vld [vmem:[#allocation12 + $0x18] sm:$0xff]
    %vm197 = vcmask 261120
    %v199 = vsel %vm197, %v190, 0
    %201 = vmatpush.msra.mxu0 0.0
    %202 = vmatpush.msra.mxu0 0.0
    %203 = vmatpush.msra.mxu0 0.0
    %204 = vmatpush.msra.mxu0 0.0
    %205 = vmatpush.msra.mxu0 0.0
    %206 = vmatpush.msra.mxu0 0.0
    %207 = vmatpush.msra.mxu0 0.0
    %208 = vmatpush.msra.mxu0 0.0
    %209 = vmatpush.msra.mxu0 0.0
    %210 = vmatpush.msra.mxu0 0.0
    %211 = vmatpush.msra.mxu0 0.0
    %212 = vmatpush.msra.mxu0 0.0
    %213 = vmatpush.msra.mxu0 %v196
    %214 = vmatpush.msra.mxu0 %v195
    %215 = vmatpush.msra.mxu0 %v194
    %216 = vmatpush.msra.mxu0 %v193
    %217 = vmatmul.f32.gmra.mxu0 %v199
    %v218 = vpop.f32.mrf.mxu0
    %v219 = vadd.f32 0.0, %v218
    %220 = vdwg.mxu0
    %v221 = vld [vmem:[#allocation13] sm:$0xff]
    %v222 = vld [vmem:[#allocation13 + $0x8] sm:$0xff]
    %v223 = vld [vmem:[#allocation13 + $0x10] sm:$0xff]
    %v224 = vld [vmem:[#allocation13 + $0x18] sm:$0xff]
    %v226 = vsel %vm197, %v191, 0
    %228 = vmatpush.msra.mxu0 0.0
    %229 = vmatpush.msra.mxu0 0.0
    %230 = vmatpush.msra.mxu0 0.0
    %231 = vmatpush.msra.mxu0 0.0
    %232 = vmatpush.msra.mxu0 0.0
    %233 = vmatpush.msra.mxu0 0.0
    %234 = vmatpush.msra.mxu0 0.0
    %235 = vmatpush.msra.mxu0 0.0
    %236 = vmatpush.msra.mxu0 0.0
    %237 = vmatpush.msra.mxu0 0.0
    %238 = vmatpush.msra.mxu0 0.0
    %239 = vmatpush.msra.mxu0 0.0
    %240 = vmatpush.msra.mxu0 %v224
    %241 = vmatpush.msra.mxu0 %v223
    %242 = vmatpush.msra.mxu0 %v222
    %243 = vmatpush.msra.mxu0 %v221
    %244 = vmatmul.f32.gmra.mxu0 %v226
    %v245 = vpop.f32.mrf.mxu0
    %v246 = vadd.f32 0.0, %v245
    %247 = vdwg.mxu0
    %v249 = vrot.slane %v219, 1
    %v250 = vrot.slane %v219, 2
    %v251 = vrot.slane %v219, 3
    %v252 = vrot.slane %v219, 4
    %v253 = vrot.slane %v219, 5
    %v254 = vrot.slane %v219, 6
    %v255 = vrot.slane %v219, 7
    %v256 = vperm.slane %v219, 0
    %v257 = vperm.slane %v249, 0
    %v258 = vperm.slane %v250, 0
    %v259 = vperm.slane %v251, 0
    %v260 = vperm.slane %v252, 0
    %v261 = vperm.slane %v253, 0
    %v262 = vperm.slane %v254, 0
    %v263 = vperm.slane %v255, 0
    %v272 = vadd.f32 %v256, %v246
    %v273 = vadd.f32 %v257, %v246
    %v274 = vadd.f32 %v258, %v246
    %v275 = vadd.f32 %v259, %v246
    %v276 = vadd.f32 %v260, %v246
    %v277 = vadd.f32 %v261, %v246
    %v278 = vadd.f32 %v262, %v246
    %v279 = vadd.f32 %v263, %v246
    %v280 = vld [vmem:[%s8] sm:$0x1]
    %v282 = vperm.slane %v280, 0
    %v284 = vadd.f32 %v272, %v282
    %v285 = vadd.f32 %v273, %v282
    %v286 = vadd.f32 %v274, %v282
    %v287 = vadd.f32 %v275, %v282
    %v288 = vadd.f32 %v276, %v282
    %v289 = vadd.f32 %v277, %v282
    %v290 = vadd.f32 %v278, %v282
    %v291 = vadd.f32 %v279, %v282
    %v292 = vxor.u32 %v284, 2147483648
    %v293 = vxor.u32 %v285, 2147483648
    %v294 = vxor.u32 %v286, 2147483648
    %v295 = vxor.u32 %v287, 2147483648
    %v296 = vxor.u32 %v288, 2147483648
    %v297 = vxor.u32 %v289, 2147483648
    %v298 = vxor.u32 %v290, 2147483648
    %v299 = vxor.u32 %v291, 2147483648
    %v300 = vmul.f32 %v292, 1.442695
    %v301 = vpow.pop %v300
    %v302 = vmul.f32 %v293, 1.442695
    %v303 = vpow.pop %v302
    %v304 = vmul.f32 %v294, 1.442695
    %v305 = vpow.pop %v304
    %v306 = vmul.f32 %v295, 1.442695
    %v307 = vpow.pop %v306
    %v308 = vmul.f32 %v296, 1.442695
    %v309 = vpow.pop %v308
    %v310 = vmul.f32 %v297, 1.442695
    %v311 = vpow.pop %v310
    %v312 = vmul.f32 %v298, 1.442695
    %v313 = vpow.pop %v312
    %v314 = vmul.f32 %v299, 1.442695
    %v315 = vpow.pop %v314
    %v316 = vadd.f32 %v301, 1.0
    %v317 = vadd.f32 %v303, 1.0
    %v318 = vadd.f32 %v305, 1.0
    %v319 = vadd.f32 %v307, 1.0
    %v320 = vadd.f32 %v309, 1.0
    %v321 = vadd.f32 %v311, 1.0
    %v322 = vadd.f32 %v313, 1.0
    %v323 = vadd.f32 %v315, 1.0
    %v324 = vrcp.pop %v316
    %v325 = vmul.f32 %v316, %v324
    %v326 = vsub.f32 1.0, %v325
    %v327 = vmul.f32 %v324, %v326
    %v328 = vadd.f32 %v324, %v327
    %vm329 = vweird.f32 %v316
    %vm330 = vweird.f32 %v324
    %vm331 = vmor %vm329, %vm330
    %v332 = vsel %vm331, %v324, %v328
    %v333 = vand.u32 2147483647, %v316
    %vm334 = vcmp.eq.f32.partialorder %v333, 8.507059e+37
    %v335 = vand.u32 %v316, 2147483648
    %v336 = vor.u32 1.1754944e-38, %v335
    %v337 = vsel %vm334, %v336, %v332
    %v338 = vmul.f32 1.0, %v337
    %v339 = vrcp.pop %v317
    %v340 = vmul.f32 %v317, %v339
    %v341 = vsub.f32 1.0, %v340
    %v342 = vmul.f32 %v339, %v341
    %v343 = vadd.f32 %v339, %v342
    %vm344 = vweird.f32 %v317
    %vm345 = vweird.f32 %v339
    %vm346 = vmor %vm344, %vm345
    %v347 = vsel %vm346, %v339, %v343
    %v348 = vand.u32 2147483647, %v317
    %vm349 = vcmp.eq.f32.partialorder %v348, 8.507059e+37
    %v350 = vand.u32 %v317, 2147483648
    %v351 = vor.u32 1.1754944e-38, %v350
    %v352 = vsel %vm349, %v351, %v347
    %v353 = vmul.f32 1.0, %v352
    %v354 = vrcp.pop %v318
    %v355 = vmul.f32 %v318, %v354
    %v356 = vsub.f32 1.0, %v355
    %v357 = vmul.f32 %v354, %v356
    %v358 = vadd.f32 %v354, %v357
    %vm359 = vweird.f32 %v318
    %vm360 = vweird.f32 %v354
    %vm361 = vmor %vm359, %vm360
    %v362 = vsel %vm361, %v354, %v358
    %v363 = vand.u32 2147483647, %v318
    %vm364 = vcmp.eq.f32.partialorder %v363, 8.507059e+37
    %v365 = vand.u32 %v318, 2147483648
    %v366 = vor.u32 1.1754944e-38, %v365
    %v367 = vsel %vm364, %v366, %v362
    %v368 = vmul.f32 1.0, %v367
    %v369 = vrcp.pop %v319
    %v370 = vmul.f32 %v319, %v369
    %v371 = vsub.f32 1.0, %v370
    %v372 = vmul.f32 %v369, %v371
    %v373 = vadd.f32 %v369, %v372
    %vm374 = vweird.f32 %v319
    %vm375 = vweird.f32 %v369
    %vm376 = vmor %vm374, %vm375
    %v377 = vsel %vm376, %v369, %v373
    %v378 = vand.u32 2147483647, %v319
    %vm379 = vcmp.eq.f32.partialorder %v378, 8.507059e+37
    %v380 = vand.u32 %v319, 2147483648
    %v381 = vor.u32 1.1754944e-38, %v380
    %v382 = vsel %vm379, %v381, %v377
    %v383 = vmul.f32 1.0, %v382
    %v384 = vrcp.pop %v320
    %v385 = vmul.f32 %v320, %v384
    %v386 = vsub.f32 1.0, %v385
    %v387 = vmul.f32 %v384, %v386
    %v388 = vadd.f32 %v384, %v387
    %vm389 = vweird.f32 %v320
    %vm390 = vweird.f32 %v384
    %vm391 = vmor %vm389, %vm390
    %v392 = vsel %vm391, %v384, %v388
    %v393 = vand.u32 2147483647, %v320
    %vm394 = vcmp.eq.f32.partialorder %v393, 8.507059e+37
    %v395 = vand.u32 %v320, 2147483648
    %v396 = vor.u32 1.1754944e-38, %v395
    %v397 = vsel %vm394, %v396, %v392
    %v398 = vmul.f32 1.0, %v397
    %v399 = vrcp.pop %v321
    %v400 = vmul.f32 %v321, %v399
    %v401 = vsub.f32 1.0, %v400
    %v402 = vmul.f32 %v399, %v401
    %v403 = vadd.f32 %v399, %v402
    %vm404 = vweird.f32 %v321
    %vm405 = vweird.f32 %v399
    %vm406 = vmor %vm404, %vm405
    %v407 = vsel %vm406, %v399, %v403
    %v408 = vand.u32 2147483647, %v321
    %vm409 = vcmp.eq.f32.partialorder %v408, 8.507059e+37
    %v410 = vand.u32 %v321, 2147483648
    %v411 = vor.u32 1.1754944e-38, %v410
    %v412 = vsel %vm409, %v411, %v407
    %v413 = vmul.f32 1.0, %v412
    %v414 = vrcp.pop %v322
    %v415 = vmul.f32 %v322, %v414
    %v416 = vsub.f32 1.0, %v415
    %v417 = vmul.f32 %v414, %v416
    %v418 = vadd.f32 %v414, %v417
    %vm419 = vweird.f32 %v322
    %vm420 = vweird.f32 %v414
    %vm421 = vmor %vm419, %vm420
    %v422 = vsel %vm421, %v414, %v418
    %v423 = vand.u32 2147483647, %v322
    %vm424 = vcmp.eq.f32.partialorder %v423, 8.507059e+37
    %v425 = vand.u32 %v322, 2147483648
    %v426 = vor.u32 1.1754944e-38, %v425
    %v427 = vsel %vm424, %v426, %v422
    %v428 = vmul.f32 1.0, %v427
    %v429 = vrcp.pop %v323
    %v430 = vmul.f32 %v323, %v429
    %v431 = vsub.f32 1.0, %v430
    %v432 = vmul.f32 %v429, %v431
    %v433 = vadd.f32 %v429, %v432
    %vm434 = vweird.f32 %v323
    %vm435 = vweird.f32 %v429
    %vm436 = vmor %vm434, %vm435
    %v437 = vsel %vm436, %v429, %v433
    %v438 = vand.u32 2147483647, %v323
    %vm439 = vcmp.eq.f32.partialorder %v438, 8.507059e+37
    %v440 = vand.u32 %v323, 2147483648
    %v441 = vor.u32 1.1754944e-38, %v440
    %v442 = vsel %vm439, %v441, %v437
    %v443 = vmul.f32 1.0, %v442
    %444 = vadd.xlane.f32.xlu0 %v338
    %v445 = vpop.xlane.xlu0 %444
    %446 = vadd.xlane.f32.xlu0 %v353
    %v447 = vpop.xlane.xlu0 %446
    %448 = vadd.xlane.f32.xlu0 %v368
    %v449 = vpop.xlane.xlu0 %448
    %450 = vadd.xlane.f32.xlu0 %v383
    %v451 = vpop.xlane.xlu0 %450
    %452 = vadd.xlane.f32.xlu0 %v398
    %v453 = vpop.xlane.xlu0 %452
    %454 = vadd.xlane.f32.xlu0 %v413
    %v455 = vpop.xlane.xlu0 %454
    %456 = vadd.xlane.f32.xlu0 %v428
    %v457 = vpop.xlane.xlu0 %456
    %458 = vadd.xlane.f32.xlu0 %v443
    %v459 = vpop.xlane.xlu0 %458
    %v460 = vrcp.pop 128.0
    %v461 = vmul.f32 128.0, %v460
    %v462 = vsub.f32 1.0, %v461
    %v463 = vmul.f32 %v460, %v462
    %v464 = vadd.f32 %v460, %v463
    %vm465 = vweird.f32 %v460
    %v466 = vsel %vm465, %v460, %v464
    %v467 = vmul.f32 %v445, %v466
    %v468 = vmul.f32 %v447, %v466
    %v469 = vmul.f32 %v449, %v466
    %v470 = vmul.f32 %v451, %v466
    %v471 = vmul.f32 %v453, %v466
    %v472 = vmul.f32 %v455, %v466
    %v473 = vmul.f32 %v457, %v466
    %v474 = vmul.f32 %v459, %v466
    %vm475 = vcmp.gt.f32.partialorder %v192, 0.0
    %v476 = vsel %vm475, 1.0, 0.0
    %vm477 = vcmask 64512
    %v478 = vsel %vm477, %v476, 0.0
    %479 = vadd.xlane.f32.xlu0 %v478
    %v480 = vpop.xlane.xlu0 %479
    %vm481 = vcmp.gt.f32.partialorder %v480, 0.0
    %v482 = vmax.f32 %v480, 1.0
    %v483 = vrcp.pop %v482
    %v484 = vmul.f32 %v482, %v483
    %v485 = vsub.f32 1.0, %v484
    %v486 = vmul.f32 %v483, %v485
    %v487 = vadd.f32 %v483, %v486
    %vm488 = vweird.f32 %v482
    %vm489 = vweird.f32 %v483
    %vm490 = vmor %vm488, %vm489
    %v491 = vsel %vm490, %v483, %v487
    %v492 = vand.u32 2147483647, %v482
    %vm493 = vcmp.eq.f32.partialorder %v492, 8.507059e+37
    %v494 = vand.u32 %v482, 2147483648
    %v495 = vor.u32 1.1754944e-38, %v494
    %v496 = vsel %vm493, %v495, %v491
    %v497 = vmul.f32 0.5, %v496
    %v498 = vsel %vm481, %v497, 0.0
    %v499 = vmul.f32 %v476, %v498
    %v508 = vlaneseq
    %v509 = vand.u32 %v508, 127
    %v510 = vperm.slane %v467, %v509
    %v511 = vperm.slane %v468, %v509
    %v512 = vperm.slane %v469, %v509
    %v513 = vperm.slane %v470, %v509
    %v514 = vperm.slane %v471, %v509
    %v515 = vperm.slane %v472, %v509
    %v516 = vperm.slane %v473, %v509
    %v517 = vperm.slane %v474, %v509
    %vm518 = vcmask 1041409
    %v519 = vsel %vm518, %v511, %v510
    %vm520 = vcmask 1042434
    %v521 = vsel %vm520, %v512, %v519
    %vm522 = vcmask 1043459
    %v523 = vsel %vm522, %v513, %v521
    %vm524 = vcmask 1044484
    %v525 = vsel %vm524, %v514, %v523
    %vm526 = vcmask 1045509
    %v527 = vsel %vm526, %v515, %v525
    %vm528 = vcmask 1046534
    %v529 = vsel %vm528, %v516, %v527
    %vm530 = vcmask 1047559
    %v531 = vsel %vm530, %v517, %v529
    %v533 = vmul.f32 %v499, %v531
    %v534 = vld [vmem:[#allocation7] sm:$0xff]
    %s535 = scalar_lea.vmem [#allocation12], 32
    %v536 = vld [vmem:[%s535] sm:$0xff]
    %v537 = vld [vmem:[%s535 + $0x8] sm:$0xff]
    %v538 = vld [vmem:[%s535 + $0x10] sm:$0xff]
    %v539 = vld [vmem:[%s535 + $0x18] sm:$0xff]
    %540 = vmatpush.msra.mxu0 0.0
    %541 = vmatpush.msra.mxu0 0.0
    %542 = vmatpush.msra.mxu0 0.0
    %543 = vmatpush.msra.mxu0 0.0
    %544 = vmatpush.msra.mxu0 0.0
    %545 = vmatpush.msra.mxu0 0.0
    %546 = vmatpush.msra.mxu0 0.0
    %547 = vmatpush.msra.mxu0 0.0
    %548 = vmatpush.msra.mxu0 0.0
    %549 = vmatpush.msra.mxu0 0.0
    %550 = vmatpush.msra.mxu0 0.0
    %551 = vmatpush.msra.mxu0 0.0
    %552 = vmatpush.msra.mxu0 %v539
    %553 = vmatpush.msra.mxu0 %v538
    %554 = vmatpush.msra.mxu0 %v537
    %555 = vmatpush.msra.mxu0 %v536
    %556 = vmatmul.f32.gmra.mxu0 %v199
    %v557 = vpop.f32.mrf.mxu0
    %v558 = vadd.f32 0.0, %v557
    %559 = vdwg.mxu0
    %s560 = scalar_lea.vmem [#allocation13], 32
    %v561 = vld [vmem:[%s560] sm:$0xff]
    %v562 = vld [vmem:[%s560 + $0x8] sm:$0xff]
    %v563 = vld [vmem:[%s560 + $0x10] sm:$0xff]
    %v564 = vld [vmem:[%s560 + $0x18] sm:$0xff]
    %565 = vmatpush.msra.mxu0 0.0
    %566 = vmatpush.msra.mxu0 0.0
    %567 = vmatpush.msra.mxu0 0.0
    %568 = vmatpush.msra.mxu0 0.0
    %569 = vmatpush.msra.mxu0 0.0
    %570 = vmatpush.msra.mxu0 0.0
    %571 = vmatpush.msra.mxu0 0.0
    %572 = vmatpush.msra.mxu0 0.0
    %573 = vmatpush.msra.mxu0 0.0
    %574 = vmatpush.msra.mxu0 0.0
    %575 = vmatpush.msra.mxu0 0.0
    %576 = vmatpush.msra.mxu0 0.0
    %577 = vmatpush.msra.mxu0 %v564
    %578 = vmatpush.msra.mxu0 %v563
    %579 = vmatpush.msra.mxu0 %v562
    %580 = vmatpush.msra.mxu0 %v561
    %581 = vmatmul.f32.gmra.mxu0 %v226
    %v582 = vpop.f32.mrf.mxu0
    %v583 = vadd.f32 0.0, %v582
    %584 = vdwg.mxu0
    %v586 = vrot.slane %v558, 1
    %v587 = vrot.slane %v558, 2
    %v588 = vrot.slane %v558, 3
    %v589 = vrot.slane %v558, 4
    %v590 = vrot.slane %v558, 5
    %v591 = vrot.slane %v558, 6
    %v592 = vrot.slane %v558, 7
    %v593 = vperm.slane %v558, 0
    %v594 = vperm.slane %v586, 0
    %v595 = vperm.slane %v587, 0
    %v596 = vperm.slane %v588, 0
    %v597 = vperm.slane %v589, 0
    %v598 = vperm.slane %v590, 0
    %v599 = vperm.slane %v591, 0
    %v600 = vperm.slane %v592, 0
    %v609 = vadd.f32 %v593, %v583
    %v610 = vadd.f32 %v594, %v583
    %v611 = vadd.f32 %v595, %v583
    %v612 = vadd.f32 %v596, %v583
    %v613 = vadd.f32 %v597, %v583
    %v614 = vadd.f32 %v598, %v583
    %v615 = vadd.f32 %v599, %v583
    %v616 = vadd.f32 %v600, %v583
    %s617 = scalar_lea.vmem %s8, 1
    %v618 = vld [vmem:[%s617] sm:$0x1]
    %v620 = vperm.slane %v618, 0
    %v622 = vadd.f32 %v609, %v620
    %v623 = vadd.f32 %v610, %v620
    %v624 = vadd.f32 %v611, %v620
    %v625 = vadd.f32 %v612, %v620
    %v626 = vadd.f32 %v613, %v620
    %v627 = vadd.f32 %v614, %v620
    %v628 = vadd.f32 %v615, %v620
    %v629 = vadd.f32 %v616, %v620
    %v630 = vxor.u32 %v622, 2147483648
    %v631 = vxor.u32 %v623, 2147483648
    %v632 = vxor.u32 %v624, 2147483648
    %v633 = vxor.u32 %v625, 2147483648
    %v634 = vxor.u32 %v626, 2147483648
    %v635 = vxor.u32 %v627, 2147483648
    %v636 = vxor.u32 %v628, 2147483648
    %v637 = vxor.u32 %v629, 2147483648
    %v638 = vmul.f32 %v630, 1.442695
    %v639 = vpow.pop %v638
    %v640 = vmul.f32 %v631, 1.442695
    %v641 = vpow.pop %v640
    %v642 = vmul.f32 %v632, 1.442695
    %v643 = vpow.pop %v642
    %v644 = vmul.f32 %v633, 1.442695
    %v645 = vpow.pop %v644
    %v646 = vmul.f32 %v634, 1.442695
    %v647 = vpow.pop %v646
    %v648 = vmul.f32 %v635, 1.442695
    %v649 = vpow.pop %v648
    %v650 = vmul.f32 %v636, 1.442695
    %v651 = vpow.pop %v650
    %v652 = vmul.f32 %v637, 1.442695
    %v653 = vpow.pop %v652
    %v654 = vadd.f32 %v639, 1.0
    %v655 = vadd.f32 %v641, 1.0
    %v656 = vadd.f32 %v643, 1.0
    %v657 = vadd.f32 %v645, 1.0
    %v658 = vadd.f32 %v647, 1.0
    %v659 = vadd.f32 %v649, 1.0
    %v660 = vadd.f32 %v651, 1.0
    %v661 = vadd.f32 %v653, 1.0
    %v662 = vrcp.pop %v654
    %v663 = vmul.f32 %v654, %v662
    %v664 = vsub.f32 1.0, %v663
    %v665 = vmul.f32 %v662, %v664
    %v666 = vadd.f32 %v662, %v665
    %vm667 = vweird.f32 %v654
    %vm668 = vweird.f32 %v662
    %vm669 = vmor %vm667, %vm668
    %v670 = vsel %vm669, %v662, %v666
    %v671 = vand.u32 2147483647, %v654
    %vm672 = vcmp.eq.f32.partialorder %v671, 8.507059e+37
    %v673 = vand.u32 %v654, 2147483648
    %v674 = vor.u32 1.1754944e-38, %v673
    %v675 = vsel %vm672, %v674, %v670
    %v676 = vmul.f32 1.0, %v675
    %v677 = vrcp.pop %v655
    %v678 = vmul.f32 %v655, %v677
    %v679 = vsub.f32 1.0, %v678
    %v680 = vmul.f32 %v677, %v679
    %v681 = vadd.f32 %v677, %v680
    %vm682 = vweird.f32 %v655
    %vm683 = vweird.f32 %v677
    %vm684 = vmor %vm682, %vm683
    %v685 = vsel %vm684, %v677, %v681
    %v686 = vand.u32 2147483647, %v655
    %vm687 = vcmp.eq.f32.partialorder %v686, 8.507059e+37
    %v688 = vand.u32 %v655, 2147483648
    %v689 = vor.u32 1.1754944e-38, %v688
    %v690 = vsel %vm687, %v689, %v685
    %v691 = vmul.f32 1.0, %v690
    %v692 = vrcp.pop %v656
    %v693 = vmul.f32 %v656, %v692
    %v694 = vsub.f32 1.0, %v693
    %v695 = vmul.f32 %v692, %v694
    %v696 = vadd.f32 %v692, %v695
    %vm697 = vweird.f32 %v656
    %vm698 = vweird.f32 %v692
    %vm699 = vmor %vm697, %vm698
    %v700 = vsel %vm699, %v692, %v696
    %v701 = vand.u32 2147483647, %v656
    %vm702 = vcmp.eq.f32.partialorder %v701, 8.507059e+37
    %v703 = vand.u32 %v656, 2147483648
    %v704 = vor.u32 1.1754944e-38, %v703
    %v705 = vsel %vm702, %v704, %v700
    %v706 = vmul.f32 1.0, %v705
    %v707 = vrcp.pop %v657
    %v708 = vmul.f32 %v657, %v707
    %v709 = vsub.f32 1.0, %v708
    %v710 = vmul.f32 %v707, %v709
    %v711 = vadd.f32 %v707, %v710
    %vm712 = vweird.f32 %v657
    %vm713 = vweird.f32 %v707
    %vm714 = vmor %vm712, %vm713
    %v715 = vsel %vm714, %v707, %v711
    %v716 = vand.u32 2147483647, %v657
    %vm717 = vcmp.eq.f32.partialorder %v716, 8.507059e+37
    %v718 = vand.u32 %v657, 2147483648
    %v719 = vor.u32 1.1754944e-38, %v718
    %v720 = vsel %vm717, %v719, %v715
    %v721 = vmul.f32 1.0, %v720
    %v722 = vrcp.pop %v658
    %v723 = vmul.f32 %v658, %v722
    %v724 = vsub.f32 1.0, %v723
    %v725 = vmul.f32 %v722, %v724
    %v726 = vadd.f32 %v722, %v725
    %vm727 = vweird.f32 %v658
    %vm728 = vweird.f32 %v722
    %vm729 = vmor %vm727, %vm728
    %v730 = vsel %vm729, %v722, %v726
    %v731 = vand.u32 2147483647, %v658
    %vm732 = vcmp.eq.f32.partialorder %v731, 8.507059e+37
    %v733 = vand.u32 %v658, 2147483648
    %v734 = vor.u32 1.1754944e-38, %v733
    %v735 = vsel %vm732, %v734, %v730
    %v736 = vmul.f32 1.0, %v735
    %v737 = vrcp.pop %v659
    %v738 = vmul.f32 %v659, %v737
    %v739 = vsub.f32 1.0, %v738
    %v740 = vmul.f32 %v737, %v739
    %v741 = vadd.f32 %v737, %v740
    %vm742 = vweird.f32 %v659
    %vm743 = vweird.f32 %v737
    %vm744 = vmor %vm742, %vm743
    %v745 = vsel %vm744, %v737, %v741
    %v746 = vand.u32 2147483647, %v659
    %vm747 = vcmp.eq.f32.partialorder %v746, 8.507059e+37
    %v748 = vand.u32 %v659, 2147483648
    %v749 = vor.u32 1.1754944e-38, %v748
    %v750 = vsel %vm747, %v749, %v745
    %v751 = vmul.f32 1.0, %v750
    %v752 = vrcp.pop %v660
    %v753 = vmul.f32 %v660, %v752
    %v754 = vsub.f32 1.0, %v753
    %v755 = vmul.f32 %v752, %v754
    %v756 = vadd.f32 %v752, %v755
    %vm757 = vweird.f32 %v660
    %vm758 = vweird.f32 %v752
    %vm759 = vmor %vm757, %vm758
    %v760 = vsel %vm759, %v752, %v756
    %v761 = vand.u32 2147483647, %v660
    %vm762 = vcmp.eq.f32.partialorder %v761, 8.507059e+37
    %v763 = vand.u32 %v660, 2147483648
    %v764 = vor.u32 1.1754944e-38, %v763
    %v765 = vsel %vm762, %v764, %v760
    %v766 = vmul.f32 1.0, %v765
    %v767 = vrcp.pop %v661
    %v768 = vmul.f32 %v661, %v767
    %v769 = vsub.f32 1.0, %v768
    %v770 = vmul.f32 %v767, %v769
    %v771 = vadd.f32 %v767, %v770
    %vm772 = vweird.f32 %v661
    %vm773 = vweird.f32 %v767
    %vm774 = vmor %vm772, %vm773
    %v775 = vsel %vm774, %v767, %v771
    %v776 = vand.u32 2147483647, %v661
    %vm777 = vcmp.eq.f32.partialorder %v776, 8.507059e+37
    %v778 = vand.u32 %v661, 2147483648
    %v779 = vor.u32 1.1754944e-38, %v778
    %v780 = vsel %vm777, %v779, %v775
    %v781 = vmul.f32 1.0, %v780
    %782 = vadd.xlane.f32.xlu0 %v676
    %v783 = vpop.xlane.xlu0 %782
    %784 = vadd.xlane.f32.xlu0 %v691
    %v785 = vpop.xlane.xlu0 %784
    %786 = vadd.xlane.f32.xlu0 %v706
    %v787 = vpop.xlane.xlu0 %786
    %788 = vadd.xlane.f32.xlu0 %v721
    %v789 = vpop.xlane.xlu0 %788
    %790 = vadd.xlane.f32.xlu0 %v736
    %v791 = vpop.xlane.xlu0 %790
    %792 = vadd.xlane.f32.xlu0 %v751
    %v793 = vpop.xlane.xlu0 %792
    %794 = vadd.xlane.f32.xlu0 %v766
    %v795 = vpop.xlane.xlu0 %794
    %796 = vadd.xlane.f32.xlu0 %v781
    %v797 = vpop.xlane.xlu0 %796
    %v798 = vmul.f32 %v783, %v466
    %v799 = vmul.f32 %v785, %v466
    %v800 = vmul.f32 %v787, %v466
    %v801 = vmul.f32 %v789, %v466
    %v802 = vmul.f32 %v791, %v466
    %v803 = vmul.f32 %v793, %v466
    %v804 = vmul.f32 %v795, %v466
    %v805 = vmul.f32 %v797, %v466
    %vm806 = vcmp.gt.f32.partialorder %v534, 0.0
    %v807 = vsel %vm806, 1.0, 0.0
    %v808 = vsel %vm477, %v807, 0.0
    %809 = vadd.xlane.f32.xlu0 %v808
    %v810 = vpop.xlane.xlu0 %809
    %vm811 = vcmp.gt.f32.partialorder %v810, 0.0
    %v812 = vmax.f32 %v810, 1.0
    %v813 = vrcp.pop %v812
    %v814 = vmul.f32 %v812, %v813
    %v815 = vsub.f32 1.0, %v814
    %v816 = vmul.f32 %v813, %v815
    %v817 = vadd.f32 %v813, %v816
    %vm818 = vweird.f32 %v812
    %vm819 = vweird.f32 %v813
    %vm820 = vmor %vm818, %vm819
    %v821 = vsel %vm820, %v813, %v817
    %v822 = vand.u32 2147483647, %v812
    %vm823 = vcmp.eq.f32.partialorder %v822, 8.507059e+37
    %v824 = vand.u32 %v812, 2147483648
    %v825 = vor.u32 1.1754944e-38, %v824
    %v826 = vsel %vm823, %v825, %v821
    %v827 = vmul.f32 0.5, %v826
    %v828 = vsel %vm811, %v827, 0.0
    %v829 = vmul.f32 %v807, %v828
    %v838 = vperm.slane %v798, %v509
    %v839 = vperm.slane %v799, %v509
    %v840 = vperm.slane %v800, %v509
    %v841 = vperm.slane %v801, %v509
    %v842 = vperm.slane %v802, %v509
    %v843 = vperm.slane %v803, %v509
    %v844 = vperm.slane %v804, %v509
    %v845 = vperm.slane %v805, %v509
    %v846 = vsel %vm518, %v839, %v838
    %v847 = vsel %vm520, %v840, %v846
    %v848 = vsel %vm522, %v841, %v847
    %v849 = vsel %vm524, %v842, %v848
    %v850 = vsel %vm526, %v843, %v849
    %v851 = vsel %vm528, %v844, %v850
    %v852 = vsel %vm530, %v845, %v851
    %v854 = vmul.f32 %v829, %v852
    %v856 = vsel %vm477, %v854, 0
    %858 = vmatpush.msra.mxu0 0.0
    %859 = vmatpush.msra.mxu0 0.0
    %860 = vmatpush.msra.mxu0 0.0
    %861 = vmatpush.msra.mxu0 0.0
    %862 = vmatpush.msra.mxu0 0.0
    %863 = vmatpush.msra.mxu0 0.0
    %864 = vmatpush.msra.mxu0 0.0
    %865 = vmatpush.msra.mxu0 0.0
    %866 = vmatpush.msra.mxu0 0.0
    %867 = vmatpush.msra.mxu0 0.0
    %868 = vmatpush.msra.mxu0 0.0
    %869 = vmatpush.msra.mxu0 0.0
    %870 = vmatpush.msra.mxu0 0.0
    %871 = vmatpush.msra.mxu0 0.0
    %872 = vmatpush.msra.mxu0 0.0
    %873 = vmatpush.msra.mxu0 %v189
    %874 = vmatmul.f32.gmra.mxu0 %v856
    %v875 = vpop.f32.mrf.mxu0
    %v876 = vadd.f32 0.0, %v875
    %877 = vdwg.mxu0
    %v879 = vsel %vm477, %v533, 0
    %881 = vmatpush.msra.mxu0 0.0
    %882 = vmatpush.msra.mxu0 0.0
    %883 = vmatpush.msra.mxu0 0.0
    %884 = vmatpush.msra.mxu0 0.0
    %885 = vmatpush.msra.mxu0 0.0
    %886 = vmatpush.msra.mxu0 0.0
    %887 = vmatpush.msra.mxu0 0.0
    %888 = vmatpush.msra.mxu0 0.0
    %889 = vmatpush.msra.mxu0 0.0
    %890 = vmatpush.msra.mxu0 0.0
    %891 = vmatpush.msra.mxu0 0.0
    %892 = vmatpush.msra.mxu0 0.0
    %893 = vmatpush.msra.mxu0 0.0
    %894 = vmatpush.msra.mxu0 0.0
    %895 = vmatpush.msra.mxu0 0.0
    %896 = vmatpush.msra.mxu0 %v189
    %897 = vmatmul.f32.gmra.mxu0 %v879
    %v898 = vpop.f32.mrf.mxu0
    %v899 = vadd.f32 %v876, %v898
    %900 = vdwg.mxu0
    %v901 = vld [vmem:[#allocation9] sm:$0xff]
    %s902 = scalar_lea.vmem [#allocation12], 64
    %v903 = vld [vmem:[%s902] sm:$0xff]
    %v904 = vld [vmem:[%s902 + $0x8] sm:$0xff]
    %v905 = vld [vmem:[%s902 + $0x10] sm:$0xff]
    %v906 = vld [vmem:[%s902 + $0x18] sm:$0xff]
    %907 = vmatpush.msra.mxu0 0.0
    %908 = vmatpush.msra.mxu0 0.0
    %909 = vmatpush.msra.mxu0 0.0
    %910 = vmatpush.msra.mxu0 0.0
    %911 = vmatpush.msra.mxu0 0.0
    %912 = vmatpush.msra.mxu0 0.0
    %913 = vmatpush.msra.mxu0 0.0
    %914 = vmatpush.msra.mxu0 0.0
    %915 = vmatpush.msra.mxu0 0.0
    %916 = vmatpush.msra.mxu0 0.0
    %917 = vmatpush.msra.mxu0 0.0
    %918 = vmatpush.msra.mxu0 0.0
    %919 = vmatpush.msra.mxu0 %v906
    %920 = vmatpush.msra.mxu0 %v905
    %921 = vmatpush.msra.mxu0 %v904
    %922 = vmatpush.msra.mxu0 %v903
    %923 = vmatmul.f32.gmra.mxu0 %v226
    %v924 = vpop.f32.mrf.mxu0
    %v925 = vadd.f32 0.0, %v924
    %926 = vdwg.mxu0
    %s927 = scalar_lea.vmem [#allocation13], 64
    %v928 = vld [vmem:[%s927] sm:$0xff]
    %v929 = vld [vmem:[%s927 + $0x8] sm:$0xff]
    %v930 = vld [vmem:[%s927 + $0x10] sm:$0xff]
    %v931 = vld [vmem:[%s927 + $0x18] sm:$0xff]
    %932 = vmatpush.msra.mxu0 0.0
    %933 = vmatpush.msra.mxu0 0.0
    %934 = vmatpush.msra.mxu0 0.0
    %935 = vmatpush.msra.mxu0 0.0
    %936 = vmatpush.msra.mxu0 0.0
    %937 = vmatpush.msra.mxu0 0.0
    %938 = vmatpush.msra.mxu0 0.0
    %939 = vmatpush.msra.mxu0 0.0
    %940 = vmatpush.msra.mxu0 0.0
    %941 = vmatpush.msra.mxu0 0.0
    %942 = vmatpush.msra.mxu0 0.0
    %943 = vmatpush.msra.mxu0 0.0
    %944 = vmatpush.msra.mxu0 %v931
    %945 = vmatpush.msra.mxu0 %v930
    %946 = vmatpush.msra.mxu0 %v929
    %947 = vmatpush.msra.mxu0 %v928
    %948 = vmatmul.f32.gmra.mxu0 %v199
    %v949 = vpop.f32.mrf.mxu0
    %v950 = vadd.f32 0.0, %v949
    %951 = vdwg.mxu0
    %v953 = vrot.slane %v925, 1
    %v954 = vrot.slane %v925, 2
    %v955 = vrot.slane %v925, 3
    %v956 = vrot.slane %v925, 4
    %v957 = vrot.slane %v925, 5
    %v958 = vrot.slane %v925, 6
    %v959 = vrot.slane %v925, 7
    %v960 = vperm.slane %v925, 0
    %v961 = vperm.slane %v953, 0
    %v962 = vperm.slane %v954, 0
    %v963 = vperm.slane %v955, 0
    %v964 = vperm.slane %v956, 0
    %v965 = vperm.slane %v957, 0
    %v966 = vperm.slane %v958, 0
    %v967 = vperm.slane %v959, 0
    %v976 = vadd.f32 %v960, %v950
    %v977 = vadd.f32 %v961, %v950
    %v978 = vadd.f32 %v962, %v950
    %v979 = vadd.f32 %v963, %v950
    %v980 = vadd.f32 %v964, %v950
    %v981 = vadd.f32 %v965, %v950
    %v982 = vadd.f32 %v966, %v950
    %v983 = vadd.f32 %v967, %v950
    %s984 = scalar_lea.vmem %s8, 2
    %v985 = vld [vmem:[%s984] sm:$0x1]
    %v987 = vperm.slane %v985, 0
    %v989 = vadd.f32 %v976, %v987
    %v990 = vadd.f32 %v977, %v987
    %v991 = vadd.f32 %v978, %v987
    %v992 = vadd.f32 %v979, %v987
    %v993 = vadd.f32 %v980, %v987
    %v994 = vadd.f32 %v981, %v987
    %v995 = vadd.f32 %v982, %v987
    %v996 = vadd.f32 %v983, %v987
    %v997 = vxor.u32 %v989, 2147483648
    %v998 = vxor.u32 %v990, 2147483648
    %v999 = vxor.u32 %v991, 2147483648
    %v1000 = vxor.u32 %v992, 2147483648
    %v1001 = vxor.u32 %v993, 2147483648
    %v1002 = vxor.u32 %v994, 2147483648
    %v1003 = vxor.u32 %v995, 2147483648
    %v1004 = vxor.u32 %v996, 2147483648
    %v1005 = vmul.f32 %v997, 1.442695
    %v1006 = vpow.pop %v1005
    %v1007 = vmul.f32 %v998, 1.442695
    %v1008 = vpow.pop %v1007
    %v1009 = vmul.f32 %v999, 1.442695
    %v1010 = vpow.pop %v1009
    %v1011 = vmul.f32 %v1000, 1.442695
    %v1012 = vpow.pop %v1011
    %v1013 = vmul.f32 %v1001, 1.442695
    %v1014 = vpow.pop %v1013
    %v1015 = vmul.f32 %v1002, 1.442695
    %v1016 = vpow.pop %v1015
    %v1017 = vmul.f32 %v1003, 1.442695
    %v1018 = vpow.pop %v1017
    %v1019 = vmul.f32 %v1004, 1.442695
    %v1020 = vpow.pop %v1019
    %v1021 = vadd.f32 %v1006, 1.0
    %v1022 = vadd.f32 %v1008, 1.0
    %v1023 = vadd.f32 %v1010, 1.0
    %v1024 = vadd.f32 %v1012, 1.0
    %v1025 = vadd.f32 %v1014, 1.0
    %v1026 = vadd.f32 %v1016, 1.0
    %v1027 = vadd.f32 %v1018, 1.0
    %v1028 = vadd.f32 %v1020, 1.0
    %v1029 = vrcp.pop %v1021
    %v1030 = vmul.f32 %v1021, %v1029
    %v1031 = vsub.f32 1.0, %v1030
    %v1032 = vmul.f32 %v1029, %v1031
    %v1033 = vadd.f32 %v1029, %v1032
    %vm1034 = vweird.f32 %v1021
    %vm1035 = vweird.f32 %v1029
    %vm1036 = vmor %vm1034, %vm1035
    %v1037 = vsel %vm1036, %v1029, %v1033
    %v1038 = vand.u32 2147483647, %v1021
    %vm1039 = vcmp.eq.f32.partialorder %v1038, 8.507059e+37
    %v1040 = vand.u32 %v1021, 2147483648
    %v1041 = vor.u32 1.1754944e-38, %v1040
    %v1042 = vsel %vm1039, %v1041, %v1037
    %v1043 = vmul.f32 1.0, %v1042
    %v1044 = vrcp.pop %v1022
    %v1045 = vmul.f32 %v1022, %v1044
    %v1046 = vsub.f32 1.0, %v1045
    %v1047 = vmul.f32 %v1044, %v1046
    %v1048 = vadd.f32 %v1044, %v1047
    %vm1049 = vweird.f32 %v1022
    %vm1050 = vweird.f32 %v1044
    %vm1051 = vmor %vm1049, %vm1050
    %v1052 = vsel %vm1051, %v1044, %v1048
    %v1053 = vand.u32 2147483647, %v1022
    %vm1054 = vcmp.eq.f32.partialorder %v1053, 8.507059e+37
    %v1055 = vand.u32 %v1022, 2147483648
    %v1056 = vor.u32 1.1754944e-38, %v1055
    %v1057 = vsel %vm1054, %v1056, %v1052
    %v1058 = vmul.f32 1.0, %v1057
    %v1059 = vrcp.pop %v1023
    %v1060 = vmul.f32 %v1023, %v1059
    %v1061 = vsub.f32 1.0, %v1060
    %v1062 = vmul.f32 %v1059, %v1061
    %v1063 = vadd.f32 %v1059, %v1062
    %vm1064 = vweird.f32 %v1023
    %vm1065 = vweird.f32 %v1059
    %vm1066 = vmor %vm1064, %vm1065
    %v1067 = vsel %vm1066, %v1059, %v1063
    %v1068 = vand.u32 2147483647, %v1023
    %vm1069 = vcmp.eq.f32.partialorder %v1068, 8.507059e+37
    %v1070 = vand.u32 %v1023, 2147483648
    %v1071 = vor.u32 1.1754944e-38, %v1070
    %v1072 = vsel %vm1069, %v1071, %v1067
    %v1073 = vmul.f32 1.0, %v1072
    %v1074 = vrcp.pop %v1024
    %v1075 = vmul.f32 %v1024, %v1074
    %v1076 = vsub.f32 1.0, %v1075
    %v1077 = vmul.f32 %v1074, %v1076
    %v1078 = vadd.f32 %v1074, %v1077
    %vm1079 = vweird.f32 %v1024
    %vm1080 = vweird.f32 %v1074
    %vm1081 = vmor %vm1079, %vm1080
    %v1082 = vsel %vm1081, %v1074, %v1078
    %v1083 = vand.u32 2147483647, %v1024
    %vm1084 = vcmp.eq.f32.partialorder %v1083, 8.507059e+37
    %v1085 = vand.u32 %v1024, 2147483648
    %v1086 = vor.u32 1.1754944e-38, %v1085
    %v1087 = vsel %vm1084, %v1086, %v1082
    %v1088 = vmul.f32 1.0, %v1087
    %v1089 = vrcp.pop %v1025
    %v1090 = vmul.f32 %v1025, %v1089
    %v1091 = vsub.f32 1.0, %v1090
    %v1092 = vmul.f32 %v1089, %v1091
    %v1093 = vadd.f32 %v1089, %v1092
    %vm1094 = vweird.f32 %v1025
    %vm1095 = vweird.f32 %v1089
    %vm1096 = vmor %vm1094, %vm1095
    %v1097 = vsel %vm1096, %v1089, %v1093
    %v1098 = vand.u32 2147483647, %v1025
    %vm1099 = vcmp.eq.f32.partialorder %v1098, 8.507059e+37
    %v1100 = vand.u32 %v1025, 2147483648
    %v1101 = vor.u32 1.1754944e-38, %v1100
    %v1102 = vsel %vm1099, %v1101, %v1097
    %v1103 = vmul.f32 1.0, %v1102
    %v1104 = vrcp.pop %v1026
    %v1105 = vmul.f32 %v1026, %v1104
    %v1106 = vsub.f32 1.0, %v1105
    %v1107 = vmul.f32 %v1104, %v1106
    %v1108 = vadd.f32 %v1104, %v1107
    %vm1109 = vweird.f32 %v1026
    %vm1110 = vweird.f32 %v1104
    %vm1111 = vmor %vm1109, %vm1110
    %v1112 = vsel %vm1111, %v1104, %v1108
    %v1113 = vand.u32 2147483647, %v1026
    %vm1114 = vcmp.eq.f32.partialorder %v1113, 8.507059e+37
    %v1115 = vand.u32 %v1026, 2147483648
    %v1116 = vor.u32 1.1754944e-38, %v1115
    %v1117 = vsel %vm1114, %v1116, %v1112
    %v1118 = vmul.f32 1.0, %v1117
    %v1119 = vrcp.pop %v1027
    %v1120 = vmul.f32 %v1027, %v1119
    %v1121 = vsub.f32 1.0, %v1120
    %v1122 = vmul.f32 %v1119, %v1121
    %v1123 = vadd.f32 %v1119, %v1122
    %vm1124 = vweird.f32 %v1027
    %vm1125 = vweird.f32 %v1119
    %vm1126 = vmor %vm1124, %vm1125
    %v1127 = vsel %vm1126, %v1119, %v1123
    %v1128 = vand.u32 2147483647, %v1027
    %vm1129 = vcmp.eq.f32.partialorder %v1128, 8.507059e+37
    %v1130 = vand.u32 %v1027, 2147483648
    %v1131 = vor.u32 1.1754944e-38, %v1130
    %v1132 = vsel %vm1129, %v1131, %v1127
    %v1133 = vmul.f32 1.0, %v1132
    %v1134 = vrcp.pop %v1028
    %v1135 = vmul.f32 %v1028, %v1134
    %v1136 = vsub.f32 1.0, %v1135
    %v1137 = vmul.f32 %v1134, %v1136
    %v1138 = vadd.f32 %v1134, %v1137
    %vm1139 = vweird.f32 %v1028
    %vm1140 = vweird.f32 %v1134
    %vm1141 = vmor %vm1139, %vm1140
    %v1142 = vsel %vm1141, %v1134, %v1138
    %v1143 = vand.u32 2147483647, %v1028
    %vm1144 = vcmp.eq.f32.partialorder %v1143, 8.507059e+37
    %v1145 = vand.u32 %v1028, 2147483648
    %v1146 = vor.u32 1.1754944e-38, %v1145
    %v1147 = vsel %vm1144, %v1146, %v1142
    %v1148 = vmul.f32 1.0, %v1147
    %1149 = vadd.xlane.f32.xlu0 %v1043
    %v1150 = vpop.xlane.xlu0 %1149
    %1151 = vadd.xlane.f32.xlu0 %v1058
    %v1152 = vpop.xlane.xlu0 %1151
    %1153 = vadd.xlane.f32.xlu0 %v1073
    %v1154 = vpop.xlane.xlu0 %1153
    %1155 = vadd.xlane.f32.xlu0 %v1088
    %v1156 = vpop.xlane.xlu0 %1155
    %1157 = vadd.xlane.f32.xlu0 %v1103
    %v1158 = vpop.xlane.xlu0 %1157
    %1159 = vadd.xlane.f32.xlu0 %v1118
    %v1160 = vpop.xlane.xlu0 %1159
    %1161 = vadd.xlane.f32.xlu0 %v1133
    %v1162 = vpop.xlane.xlu0 %1161
    %1163 = vadd.xlane.f32.xlu0 %v1148
    %v1164 = vpop.xlane.xlu0 %1163
    %v1165 = vmul.f32 %v1150, %v466
    %v1166 = vmul.f32 %v1152, %v466
    %v1167 = vmul.f32 %v1154, %v466
    %v1168 = vmul.f32 %v1156, %v466
    %v1169 = vmul.f32 %v1158, %v466
    %v1170 = vmul.f32 %v1160, %v466
    %v1171 = vmul.f32 %v1162, %v466
    %v1172 = vmul.f32 %v1164, %v466
    %vm1173 = vcmp.gt.f32.partialorder %v901, 0.0
    %v1174 = vsel %vm1173, 1.0, 0.0
    %v1175 = vsel %vm477, %v1174, 0.0
    %1176 = vadd.xlane.f32.xlu0 %v1175
    %v1177 = vpop.xlane.xlu0 %1176
    %vm1178 = vcmp.gt.f32.partialorder %v1177, 0.0
    %v1179 = vmax.f32 %v1177, 1.0
    %v1180 = vrcp.pop %v1179
    %v1181 = vmul.f32 %v1179, %v1180
    %v1182 = vsub.f32 1.0, %v1181
    %v1183 = vmul.f32 %v1180, %v1182
    %v1184 = vadd.f32 %v1180, %v1183
    %vm1185 = vweird.f32 %v1179
    %vm1186 = vweird.f32 %v1180
    %vm1187 = vmor %vm1185, %vm1186
    %v1188 = vsel %vm1187, %v1180, %v1184
    %v1189 = vand.u32 2147483647, %v1179
    %vm1190 = vcmp.eq.f32.partialorder %v1189, 8.507059e+37
    %v1191 = vand.u32 %v1179, 2147483648
    %v1192 = vor.u32 1.1754944e-38, %v1191
    %v1193 = vsel %vm1190, %v1192, %v1188
    %v1194 = vmul.f32 0.5, %v1193
    %v1195 = vsel %vm1178, %v1194, 0.0
    %v1196 = vmul.f32 %v1174, %v1195
    %v1205 = vperm.slane %v1165, %v509
    %v1206 = vperm.slane %v1166, %v509
    %v1207 = vperm.slane %v1167, %v509
    %v1208 = vperm.slane %v1168, %v509
    %v1209 = vperm.slane %v1169, %v509
    %v1210 = vperm.slane %v1170, %v509
    %v1211 = vperm.slane %v1171, %v509
    %v1212 = vperm.slane %v1172, %v509
    %v1213 = vsel %vm518, %v1206, %v1205
    %v1214 = vsel %vm520, %v1207, %v1213
    %v1215 = vsel %vm522, %v1208, %v1214
    %v1216 = vsel %vm524, %v1209, %v1215
    %v1217 = vsel %vm526, %v1210, %v1216
    %v1218 = vsel %vm528, %v1211, %v1217
    %v1219 = vsel %vm530, %v1212, %v1218
    %v1221 = vmul.f32 %v1196, %v1219
    %v1222 = vld [vmem:[#allocation10] sm:$0xff]
    %s1223 = scalar_lea.vmem [#allocation12], 96
    %v1224 = vld [vmem:[%s1223] sm:$0xff]
    %v1225 = vld [vmem:[%s1223 + $0x8] sm:$0xff]
    %v1226 = vld [vmem:[%s1223 + $0x10] sm:$0xff]
    %v1227 = vld [vmem:[%s1223 + $0x18] sm:$0xff]
    %1228 = vmatpush.msra.mxu0 0.0
    %1229 = vmatpush.msra.mxu0 0.0
    %1230 = vmatpush.msra.mxu0 0.0
    %1231 = vmatpush.msra.mxu0 0.0
    %1232 = vmatpush.msra.mxu0 0.0
    %1233 = vmatpush.msra.mxu0 0.0
    %1234 = vmatpush.msra.mxu0 0.0
    %1235 = vmatpush.msra.mxu0 0.0
    %1236 = vmatpush.msra.mxu0 0.0
    %1237 = vmatpush.msra.mxu0 0.0
    %1238 = vmatpush.msra.mxu0 0.0
    %1239 = vmatpush.msra.mxu0 0.0
    %1240 = vmatpush.msra.mxu0 %v1227
    %1241 = vmatpush.msra.mxu0 %v1226
    %1242 = vmatpush.msra.mxu0 %v1225
    %1243 = vmatpush.msra.mxu0 %v1224
    %1244 = vmatmul.f32.gmra.mxu0 %v226
    %v1245 = vpop.f32.mrf.mxu0
    %v1246 = vadd.f32 0.0, %v1245
    %1247 = vdwg.mxu0
    %s1248 = scalar_lea.vmem [#allocation13], 96
    %v1249 = vld [vmem:[%s1248] sm:$0xff]
    %v1250 = vld [vmem:[%s1248 + $0x8] sm:$0xff]
    %v1251 = vld [vmem:[%s1248 + $0x10] sm:$0xff]
    %v1252 = vld [vmem:[%s1248 + $0x18] sm:$0xff]
    %1253 = vmatpush.msra.mxu0 0.0
    %1254 = vmatpush.msra.mxu0 0.0
    %1255 = vmatpush.msra.mxu0 0.0
    %1256 = vmatpush.msra.mxu0 0.0
    %1257 = vmatpush.msra.mxu0 0.0
    %1258 = vmatpush.msra.mxu0 0.0
    %1259 = vmatpush.msra.mxu0 0.0
    %1260 = vmatpush.msra.mxu0 0.0
    %1261 = vmatpush.msra.mxu0 0.0
    %1262 = vmatpush.msra.mxu0 0.0
    %1263 = vmatpush.msra.mxu0 0.0
    %1264 = vmatpush.msra.mxu0 0.0
    %1265 = vmatpush.msra.mxu0 %v1252
    %1266 = vmatpush.msra.mxu0 %v1251
    %1267 = vmatpush.msra.mxu0 %v1250
    %1268 = vmatpush.msra.mxu0 %v1249
    %1269 = vmatmul.f32.gmra.mxu0 %v199
    %v1270 = vpop.f32.mrf.mxu0
    %v1271 = vadd.f32 0.0, %v1270
    %1272 = vdwg.mxu0
    %v1274 = vrot.slane %v1246, 1
    %v1275 = vrot.slane %v1246, 2
    %v1276 = vrot.slane %v1246, 3
    %v1277 = vrot.slane %v1246, 4
    %v1278 = vrot.slane %v1246, 5
    %v1279 = vrot.slane %v1246, 6
    %v1280 = vrot.slane %v1246, 7
    %v1281 = vperm.slane %v1246, 0
    %v1282 = vperm.slane %v1274, 0
    %v1283 = vperm.slane %v1275, 0
    %v1284 = vperm.slane %v1276, 0
    %v1285 = vperm.slane %v1277, 0
    %v1286 = vperm.slane %v1278, 0
    %v1287 = vperm.slane %v1279, 0
    %v1288 = vperm.slane %v1280, 0
    %v1297 = vadd.f32 %v1281, %v1271
    %v1298 = vadd.f32 %v1282, %v1271
    %v1299 = vadd.f32 %v1283, %v1271
    %v1300 = vadd.f32 %v1284, %v1271
    %v1301 = vadd.f32 %v1285, %v1271
    %v1302 = vadd.f32 %v1286, %v1271
    %v1303 = vadd.f32 %v1287, %v1271
    %v1304 = vadd.f32 %v1288, %v1271
    %s1305 = scalar_lea.vmem %s8, 3
    %v1306 = vld [vmem:[%s1305] sm:$0x1]
    %v1308 = vperm.slane %v1306, 0
    %v1310 = vadd.f32 %v1297, %v1308
    %v1311 = vadd.f32 %v1298, %v1308
    %v1312 = vadd.f32 %v1299, %v1308
    %v1313 = vadd.f32 %v1300, %v1308
    %v1314 = vadd.f32 %v1301, %v1308
    %v1315 = vadd.f32 %v1302, %v1308
    %v1316 = vadd.f32 %v1303, %v1308
    %v1317 = vadd.f32 %v1304, %v1308
    %v1318 = vxor.u32 %v1310, 2147483648
    %v1319 = vxor.u32 %v1311, 2147483648
    %v1320 = vxor.u32 %v1312, 2147483648
    %v1321 = vxor.u32 %v1313, 2147483648
    %v1322 = vxor.u32 %v1314, 2147483648
    %v1323 = vxor.u32 %v1315, 2147483648
    %v1324 = vxor.u32 %v1316, 2147483648
    %v1325 = vxor.u32 %v1317, 2147483648
    %v1326 = vmul.f32 %v1318, 1.442695
    %v1327 = vpow.pop %v1326
    %v1328 = vmul.f32 %v1319, 1.442695
    %v1329 = vpow.pop %v1328
    %v1330 = vmul.f32 %v1320, 1.442695
    %v1331 = vpow.pop %v1330
    %v1332 = vmul.f32 %v1321, 1.442695
    %v1333 = vpow.pop %v1332
    %v1334 = vmul.f32 %v1322, 1.442695
    %v1335 = vpow.pop %v1334
    %v1336 = vmul.f32 %v1323, 1.442695
    %v1337 = vpow.pop %v1336
    %v1338 = vmul.f32 %v1324, 1.442695
    %v1339 = vpow.pop %v1338
    %v1340 = vmul.f32 %v1325, 1.442695
    %v1341 = vpow.pop %v1340
    %v1342 = vadd.f32 %v1327, 1.0
    %v1343 = vadd.f32 %v1329, 1.0
    %v1344 = vadd.f32 %v1331, 1.0
    %v1345 = vadd.f32 %v1333, 1.0
    %v1346 = vadd.f32 %v1335, 1.0
    %v1347 = vadd.f32 %v1337, 1.0
    %v1348 = vadd.f32 %v1339, 1.0
    %v1349 = vadd.f32 %v1341, 1.0
    %v1350 = vrcp.pop %v1342
    %v1351 = vmul.f32 %v1342, %v1350
    %v1352 = vsub.f32 1.0, %v1351
    %v1353 = vmul.f32 %v1350, %v1352
    %v1354 = vadd.f32 %v1350, %v1353
    %vm1355 = vweird.f32 %v1342
    %vm1356 = vweird.f32 %v1350
    %vm1357 = vmor %vm1355, %vm1356
    %v1358 = vsel %vm1357, %v1350, %v1354
    %v1359 = vand.u32 2147483647, %v1342
    %vm1360 = vcmp.eq.f32.partialorder %v1359, 8.507059e+37
    %v1361 = vand.u32 %v1342, 2147483648
    %v1362 = vor.u32 1.1754944e-38, %v1361
    %v1363 = vsel %vm1360, %v1362, %v1358
    %v1364 = vmul.f32 1.0, %v1363
    %v1365 = vrcp.pop %v1343
    %v1366 = vmul.f32 %v1343, %v1365
    %v1367 = vsub.f32 1.0, %v1366
    %v1368 = vmul.f32 %v1365, %v1367
    %v1369 = vadd.f32 %v1365, %v1368
    %vm1370 = vweird.f32 %v1343
    %vm1371 = vweird.f32 %v1365
    %vm1372 = vmor %vm1370, %vm1371
    %v1373 = vsel %vm1372, %v1365, %v1369
    %v1374 = vand.u32 2147483647, %v1343
    %vm1375 = vcmp.eq.f32.partialorder %v1374, 8.507059e+37
    %v1376 = vand.u32 %v1343, 2147483648
    %v1377 = vor.u32 1.1754944e-38, %v1376
    %v1378 = vsel %vm1375, %v1377, %v1373
    %v1379 = vmul.f32 1.0, %v1378
    %v1380 = vrcp.pop %v1344
    %v1381 = vmul.f32 %v1344, %v1380
    %v1382 = vsub.f32 1.0, %v1381
    %v1383 = vmul.f32 %v1380, %v1382
    %v1384 = vadd.f32 %v1380, %v1383
    %vm1385 = vweird.f32 %v1344
    %vm1386 = vweird.f32 %v1380
    %vm1387 = vmor %vm1385, %vm1386
    %v1388 = vsel %vm1387, %v1380, %v1384
    %v1389 = vand.u32 2147483647, %v1344
    %vm1390 = vcmp.eq.f32.partialorder %v1389, 8.507059e+37
    %v1391 = vand.u32 %v1344, 2147483648
    %v1392 = vor.u32 1.1754944e-38, %v1391
    %v1393 = vsel %vm1390, %v1392, %v1388
    %v1394 = vmul.f32 1.0, %v1393
    %v1395 = vrcp.pop %v1345
    %v1396 = vmul.f32 %v1345, %v1395
    %v1397 = vsub.f32 1.0, %v1396
    %v1398 = vmul.f32 %v1395, %v1397
    %v1399 = vadd.f32 %v1395, %v1398
    %vm1400 = vweird.f32 %v1345
    %vm1401 = vweird.f32 %v1395
    %vm1402 = vmor %vm1400, %vm1401
    %v1403 = vsel %vm1402, %v1395, %v1399
    %v1404 = vand.u32 2147483647, %v1345
    %vm1405 = vcmp.eq.f32.partialorder %v1404, 8.507059e+37
    %v1406 = vand.u32 %v1345, 2147483648
    %v1407 = vor.u32 1.1754944e-38, %v1406
    %v1408 = vsel %vm1405, %v1407, %v1403
    %v1409 = vmul.f32 1.0, %v1408
    %v1410 = vrcp.pop %v1346
    %v1411 = vmul.f32 %v1346, %v1410
    %v1412 = vsub.f32 1.0, %v1411
    %v1413 = vmul.f32 %v1410, %v1412
    %v1414 = vadd.f32 %v1410, %v1413
    %vm1415 = vweird.f32 %v1346
    %vm1416 = vweird.f32 %v1410
    %vm1417 = vmor %vm1415, %vm1416
    %v1418 = vsel %vm1417, %v1410, %v1414
    %v1419 = vand.u32 2147483647, %v1346
    %vm1420 = vcmp.eq.f32.partialorder %v1419, 8.507059e+37
    %v1421 = vand.u32 %v1346, 2147483648
    %v1422 = vor.u32 1.1754944e-38, %v1421
    %v1423 = vsel %vm1420, %v1422, %v1418
    %v1424 = vmul.f32 1.0, %v1423
    %v1425 = vrcp.pop %v1347
    %v1426 = vmul.f32 %v1347, %v1425
    %v1427 = vsub.f32 1.0, %v1426
    %v1428 = vmul.f32 %v1425, %v1427
    %v1429 = vadd.f32 %v1425, %v1428
    %vm1430 = vweird.f32 %v1347
    %vm1431 = vweird.f32 %v1425
    %vm1432 = vmor %vm1430, %vm1431
    %v1433 = vsel %vm1432, %v1425, %v1429
    %v1434 = vand.u32 2147483647, %v1347
    %vm1435 = vcmp.eq.f32.partialorder %v1434, 8.507059e+37
    %v1436 = vand.u32 %v1347, 2147483648
    %v1437 = vor.u32 1.1754944e-38, %v1436
    %v1438 = vsel %vm1435, %v1437, %v1433
    %v1439 = vmul.f32 1.0, %v1438
    %v1440 = vrcp.pop %v1348
    %v1441 = vmul.f32 %v1348, %v1440
    %v1442 = vsub.f32 1.0, %v1441
    %v1443 = vmul.f32 %v1440, %v1442
    %v1444 = vadd.f32 %v1440, %v1443
    %vm1445 = vweird.f32 %v1348
    %vm1446 = vweird.f32 %v1440
    %vm1447 = vmor %vm1445, %vm1446
    %v1448 = vsel %vm1447, %v1440, %v1444
    %v1449 = vand.u32 2147483647, %v1348
    %vm1450 = vcmp.eq.f32.partialorder %v1449, 8.507059e+37
    %v1451 = vand.u32 %v1348, 2147483648
    %v1452 = vor.u32 1.1754944e-38, %v1451
    %v1453 = vsel %vm1450, %v1452, %v1448
    %v1454 = vmul.f32 1.0, %v1453
    %v1455 = vrcp.pop %v1349
    %v1456 = vmul.f32 %v1349, %v1455
    %v1457 = vsub.f32 1.0, %v1456
    %v1458 = vmul.f32 %v1455, %v1457
    %v1459 = vadd.f32 %v1455, %v1458
    %vm1460 = vweird.f32 %v1349
    %vm1461 = vweird.f32 %v1455
    %vm1462 = vmor %vm1460, %vm1461
    %v1463 = vsel %vm1462, %v1455, %v1459
    %v1464 = vand.u32 2147483647, %v1349
    %vm1465 = vcmp.eq.f32.partialorder %v1464, 8.507059e+37
    %v1466 = vand.u32 %v1349, 2147483648
    %v1467 = vor.u32 1.1754944e-38, %v1466
    %v1468 = vsel %vm1465, %v1467, %v1463
    %v1469 = vmul.f32 1.0, %v1468
    %1470 = vadd.xlane.f32.xlu0 %v1364
    %v1471 = vpop.xlane.xlu0 %1470
    %1472 = vadd.xlane.f32.xlu0 %v1379
    %v1473 = vpop.xlane.xlu0 %1472
    %1474 = vadd.xlane.f32.xlu0 %v1394
    %v1475 = vpop.xlane.xlu0 %1474
    %1476 = vadd.xlane.f32.xlu0 %v1409
    %v1477 = vpop.xlane.xlu0 %1476
    %1478 = vadd.xlane.f32.xlu0 %v1424
    %v1479 = vpop.xlane.xlu0 %1478
    %1480 = vadd.xlane.f32.xlu0 %v1439
    %v1481 = vpop.xlane.xlu0 %1480
    %1482 = vadd.xlane.f32.xlu0 %v1454
    %v1483 = vpop.xlane.xlu0 %1482
    %1484 = vadd.xlane.f32.xlu0 %v1469
    %v1485 = vpop.xlane.xlu0 %1484
    %v1486 = vmul.f32 %v1471, %v466
    %v1487 = vmul.f32 %v1473, %v466
    %v1488 = vmul.f32 %v1475, %v466
    %v1489 = vmul.f32 %v1477, %v466
    %v1490 = vmul.f32 %v1479, %v466
    %v1491 = vmul.f32 %v1481, %v466
    %v1492 = vmul.f32 %v1483, %v466
    %v1493 = vmul.f32 %v1485, %v466
    %vm1494 = vcmp.gt.f32.partialorder %v1222, 0.0
    %v1495 = vsel %vm1494, 1.0, 0.0
    %v1496 = vsel %vm477, %v1495, 0.0
    %1497 = vadd.xlane.f32.xlu0 %v1496
    %v1498 = vpop.xlane.xlu0 %1497
    %vm1499 = vcmp.gt.f32.partialorder %v1498, 0.0
    %v1500 = vmax.f32 %v1498, 1.0
    %v1501 = vrcp.pop %v1500
    %v1502 = vmul.f32 %v1500, %v1501
    %v1503 = vsub.f32 1.0, %v1502
    %v1504 = vmul.f32 %v1501, %v1503
    %v1505 = vadd.f32 %v1501, %v1504
    %vm1506 = vweird.f32 %v1500
    %vm1507 = vweird.f32 %v1501
    %vm1508 = vmor %vm1506, %vm1507
    %v1509 = vsel %vm1508, %v1501, %v1505
    %v1510 = vand.u32 2147483647, %v1500
    %vm1511 = vcmp.eq.f32.partialorder %v1510, 8.507059e+37
    %v1512 = vand.u32 %v1500, 2147483648
    %v1513 = vor.u32 1.1754944e-38, %v1512
    %v1514 = vsel %vm1511, %v1513, %v1509
    %v1515 = vmul.f32 0.5, %v1514
    %v1516 = vsel %vm1499, %v1515, 0.0
    %v1517 = vmul.f32 %v1495, %v1516
    %v1526 = vperm.slane %v1486, %v509
    %v1527 = vperm.slane %v1487, %v509
    %v1528 = vperm.slane %v1488, %v509
    %v1529 = vperm.slane %v1489, %v509
    %v1530 = vperm.slane %v1490, %v509
    %v1531 = vperm.slane %v1491, %v509
    %v1532 = vperm.slane %v1492, %v509
    %v1533 = vperm.slane %v1493, %v509
    %v1534 = vsel %vm518, %v1527, %v1526
    %v1535 = vsel %vm520, %v1528, %v1534
    %v1536 = vsel %vm522, %v1529, %v1535
    %v1537 = vsel %vm524, %v1530, %v1536
    %v1538 = vsel %vm526, %v1531, %v1537
    %v1539 = vsel %vm528, %v1532, %v1538
    %v1540 = vsel %vm530, %v1533, %v1539
    %v1542 = vmul.f32 %v1517, %v1540
    %v1544 = vsel %vm477, %v1542, 0
    %1546 = vmatpush.msra.mxu0 0.0
    %1547 = vmatpush.msra.mxu0 0.0
    %1548 = vmatpush.msra.mxu0 0.0
    %1549 = vmatpush.msra.mxu0 0.0
    %1550 = vmatpush.msra.mxu0 0.0
    %1551 = vmatpush.msra.mxu0 0.0
    %1552 = vmatpush.msra.mxu0 0.0
    %1553 = vmatpush.msra.mxu0 0.0
    %1554 = vmatpush.msra.mxu0 0.0
    %1555 = vmatpush.msra.mxu0 0.0
    %1556 = vmatpush.msra.mxu0 0.0
    %1557 = vmatpush.msra.mxu0 0.0
    %1558 = vmatpush.msra.mxu0 0.0
    %1559 = vmatpush.msra.mxu0 0.0
    %1560 = vmatpush.msra.mxu0 0.0
    %1561 = vmatpush.msra.mxu0 %v188
    %1562 = vmatmul.f32.gmra.mxu0 %v1544
    %v1563 = vpop.f32.mrf.mxu0
    %v1564 = vadd.f32 0.0, %v1563
    %1565 = vdwg.mxu0
    %v1567 = vsel %vm477, %v1221, 0
    %1569 = vmatpush.msra.mxu0 0.0
    %1570 = vmatpush.msra.mxu0 0.0
    %1571 = vmatpush.msra.mxu0 0.0
    %1572 = vmatpush.msra.mxu0 0.0
    %1573 = vmatpush.msra.mxu0 0.0
    %1574 = vmatpush.msra.mxu0 0.0
    %1575 = vmatpush.msra.mxu0 0.0
    %1576 = vmatpush.msra.mxu0 0.0
    %1577 = vmatpush.msra.mxu0 0.0
    %1578 = vmatpush.msra.mxu0 0.0
    %1579 = vmatpush.msra.mxu0 0.0
    %1580 = vmatpush.msra.mxu0 0.0
    %1581 = vmatpush.msra.mxu0 0.0
    %1582 = vmatpush.msra.mxu0 0.0
    %1583 = vmatpush.msra.mxu0 0.0
    %1584 = vmatpush.msra.mxu0 %v188
    %1585 = vmatmul.f32.gmra.mxu0 %v1567
    %v1586 = vpop.f32.mrf.mxu0
    %v1587 = vadd.f32 %v1564, %v1586
    %1588 = vdwg.mxu0
    %v1589 = vmax.f32 %v899, 0.0
    %v1590 = vld [vmem:[#allocation15] sm:$0xff]
    %v1591 = vld [vmem:[#allocation15 + $0x8] sm:$0xff]
    %v1592 = vld [vmem:[#allocation15 + $0x10] sm:$0xff]
    %v1593 = vld [vmem:[#allocation15 + $0x18] sm:$0xff]
    %v1594 = vld [vmem:[%s11] sm:$0x1]
    %v1596 = vperm.slane %v1594, 0
    %v1599 = vsel %vm197, %v1589, 0
    %1601 = vmatpush.msra.mxu0 0.0
    %1602 = vmatpush.msra.mxu0 0.0
    %1603 = vmatpush.msra.mxu0 0.0
    %1604 = vmatpush.msra.mxu0 0.0
    %1605 = vmatpush.msra.mxu0 0.0
    %1606 = vmatpush.msra.mxu0 0.0
    %1607 = vmatpush.msra.mxu0 0.0
    %1608 = vmatpush.msra.mxu0 0.0
    %1609 = vmatpush.msra.mxu0 0.0
    %1610 = vmatpush.msra.mxu0 0.0
    %1611 = vmatpush.msra.mxu0 0.0
    %1612 = vmatpush.msra.mxu0 0.0
    %1613 = vmatpush.msra.mxu0 %v1593
    %1614 = vmatpush.msra.mxu0 %v1592
    %1615 = vmatpush.msra.mxu0 %v1591
    %1616 = vmatpush.msra.mxu0 %v1590
    %1617 = vmatmul.f32.gmra.mxu0 %v1599
    %v1618 = vpop.f32.mrf.mxu0
    %v1619 = vadd.f32 %v1596, %v1618
    %1620 = vdwg.mxu0
    %v1621 = vld [vmem:[#allocation16] sm:$0xff]
    %v1622 = vld [vmem:[#allocation16 + $0x8] sm:$0xff]
    %v1623 = vld [vmem:[#allocation16 + $0x10] sm:$0xff]
    %v1624 = vld [vmem:[#allocation16 + $0x18] sm:$0xff]
    %1625 = vmatpush.msra.mxu0 0.0
    %1626 = vmatpush.msra.mxu0 0.0
    %1627 = vmatpush.msra.mxu0 0.0
    %1628 = vmatpush.msra.mxu0 0.0
    %1629 = vmatpush.msra.mxu0 0.0
    %1630 = vmatpush.msra.mxu0 0.0
    %1631 = vmatpush.msra.mxu0 0.0
    %1632 = vmatpush.msra.mxu0 0.0
    %1633 = vmatpush.msra.mxu0 0.0
    %1634 = vmatpush.msra.mxu0 0.0
    %1635 = vmatpush.msra.mxu0 0.0
    %1636 = vmatpush.msra.mxu0 0.0
    %1637 = vmatpush.msra.mxu0 %v1624
    %1638 = vmatpush.msra.mxu0 %v1623
    %1639 = vmatpush.msra.mxu0 %v1622
    %1640 = vmatpush.msra.mxu0 %v1621
    %1641 = vmatmul.f32.gmra.mxu0 %v199
    %v1642 = vpop.f32.mrf.mxu0
    %v1643 = vadd.f32 0.0, %v1642
    %1644 = vdwg.mxu0
    %v1645 = vadd.f32 %v1619, %v1643
    %v1646 = vld [vmem:[%s12] sm:$0x1]
    %v1648 = vperm.slane %v1646, 0
    %v1650 = vadd.f32 %v1645, %v1648
    %v1651 = vmax.f32 %v1587, 0.0
    %s1652 = scalar_lea.vmem [#allocation15], 32
    %v1653 = vld [vmem:[%s1652] sm:$0xff]
    %v1654 = vld [vmem:[%s1652 + $0x8] sm:$0xff]
    %v1655 = vld [vmem:[%s1652 + $0x10] sm:$0xff]
    %v1656 = vld [vmem:[%s1652 + $0x18] sm:$0xff]
    %s1657 = scalar_lea.vmem %s11, 1
    %v1658 = vld [vmem:[%s1657] sm:$0x1]
    %v1660 = vperm.slane %v1658, 0
    %v1663 = vsel %vm197, %v1651, 0
    %1665 = vmatpush.msra.mxu0 0.0
    %1666 = vmatpush.msra.mxu0 0.0
    %1667 = vmatpush.msra.mxu0 0.0
    %1668 = vmatpush.msra.mxu0 0.0
    %1669 = vmatpush.msra.mxu0 0.0
    %1670 = vmatpush.msra.mxu0 0.0
    %1671 = vmatpush.msra.mxu0 0.0
    %1672 = vmatpush.msra.mxu0 0.0
    %1673 = vmatpush.msra.mxu0 0.0
    %1674 = vmatpush.msra.mxu0 0.0
    %1675 = vmatpush.msra.mxu0 0.0
    %1676 = vmatpush.msra.mxu0 0.0
    %1677 = vmatpush.msra.mxu0 %v1656
    %1678 = vmatpush.msra.mxu0 %v1655
    %1679 = vmatpush.msra.mxu0 %v1654
    %1680 = vmatpush.msra.mxu0 %v1653
    %1681 = vmatmul.f32.gmra.mxu0 %v1663
    %v1682 = vpop.f32.mrf.mxu0
    %v1683 = vadd.f32 %v1660, %v1682
    %1684 = vdwg.mxu0
    %s1685 = scalar_lea.vmem [#allocation16], 32
    %v1686 = vld [vmem:[%s1685] sm:$0xff]
    %v1687 = vld [vmem:[%s1685 + $0x8] sm:$0xff]
    %v1688 = vld [vmem:[%s1685 + $0x10] sm:$0xff]
    %v1689 = vld [vmem:[%s1685 + $0x18] sm:$0xff]
    %1690 = vmatpush.msra.mxu0 0.0
    %1691 = vmatpush.msra.mxu0 0.0
    %1692 = vmatpush.msra.mxu0 0.0
    %1693 = vmatpush.msra.mxu0 0.0
    %1694 = vmatpush.msra.mxu0 0.0
    %1695 = vmatpush.msra.mxu0 0.0
    %1696 = vmatpush.msra.mxu0 0.0
    %1697 = vmatpush.msra.mxu0 0.0
    %1698 = vmatpush.msra.mxu0 0.0
    %1699 = vmatpush.msra.mxu0 0.0
    %1700 = vmatpush.msra.mxu0 0.0
    %1701 = vmatpush.msra.mxu0 0.0
    %1702 = vmatpush.msra.mxu0 %v1689
    %1703 = vmatpush.msra.mxu0 %v1688
    %1704 = vmatpush.msra.mxu0 %v1687
    %1705 = vmatpush.msra.mxu0 %v1686
    %1706 = vmatmul.f32.gmra.mxu0 %v226
    %v1707 = vpop.f32.mrf.mxu0
    %v1708 = vadd.f32 0.0, %v1707
    %1709 = vdwg.mxu0
    %v1710 = vadd.f32 %v1683, %v1708
    %s1711 = scalar_lea.vmem %s12, 1
    %v1712 = vld [vmem:[%s1711] sm:$0x1]
    %v1714 = vperm.slane %v1712, 0
    %v1716 = vadd.f32 %v1710, %v1714
    %1717 = vst [vmem:[%s13] sm:$0xff] %v1650
    %1718 = vst [vmem:[%s13 + $0x8] sm:$0xff] %v1716
    // Predicated region
    $region94: #{_msdn_step.1} parent=1 // pred_check
      _
    $region95: #{_msdn_step.1} parent=1 // pred_check_branch
      %1720 = sbr.rel (0) target = $region97
    $region96: #{_msdn_step.1} parent=1 // pred_region
      _
    $region97: #{_msdn_step.1} parent=1 // pred_fallthru
      _
    // Predicated region
    $region98: #{_msdn_step.1} parent=1 // pred_check
      _
    $region99: #{_msdn_step.1} parent=1 // pred_check_branch
      %1722 = sbr.rel (0) target = $region101
    $region100: #{_msdn_step.1} parent=1 // pred_region
      _
    $region101: #{_msdn_step.1} parent=1 // pred_fallthru
      _
    %1723 = vsyncpa [#allocation3], 1
    %1724 = vsyncpa [#allocation5], 1
    %1725 = vsyncpa [#allocation8], 1
    %1726 = vsyncpa [#allocation11], 1
    %1727 = vsyncpa [#allocation14], 1
    %1728 = vsyncpa [#allocation17], 1

</llo_original>
